<compile_context>
chip_gen: v5e
topology: v5e:2x2
jax: 0.10.0
libtpu: 0.0.40
codegen_flags: <defaults>
</compile_context>

<pallas_src>
import functools

import jax
import jax.numpy as jnp
import numpy as np
from jax import lax
from jax.experimental import pallas as pl
from jax.experimental.pallas import tpu as pltpu

EPS = 1e-5
_VMEM = pl.BlockSpec(memory_space=pltpu.MemorySpace.VMEM)


# ----------------------------- Pallas kernels ------------------------------ #

def _pw1_kernel(x_ref, w_ref, g_ref, b_ref, o_ref, *, g1, cin_g, cout_g):
    """conv1 (grouped 1x1, per-group bf16 matmuls) + train-mode BN1 + ReLU."""
    x = x_ref[...]                      # (P, Cin) f32
    gam = g_ref[...]                    # (1, mid)
    bet = b_ref[...]                    # (1, mid)
    for gi in range(g1):
        xg = x[:, gi * cin_g:(gi + 1) * cin_g].astype(jnp.bfloat16)
        wg = w_ref[gi]                  # (cin_g, cout_g) bf16
        y = jnp.dot(xg, wg, preferred_element_type=jnp.float32)    # MXU
        m = jnp.mean(y, axis=0, keepdims=True)
        v = jnp.mean((y - m) ** 2, axis=0, keepdims=True)
        y = (y - m) * lax.rsqrt(v + EPS)
        y = (y * gam[:, gi * cout_g:(gi + 1) * cout_g]
             + bet[:, gi * cout_g:(gi + 1) * cout_g])
        o_ref[:, gi * cout_g:(gi + 1) * cout_g] = jnp.maximum(y, 0.0)


def pw1_bn_relu(x2d, w1_groups, gamma, beta):
    P, _ = x2d.shape
    g1, cin_g, cout_g = w1_groups.shape
    mid = g1 * cout_g
    return pl.pallas_call(
        functools.partial(_pw1_kernel, g1=g1, cin_g=cin_g, cout_g=cout_g),
        in_specs=[_VMEM, _VMEM, _VMEM, _VMEM],
        out_specs=_VMEM,
        out_shape=jax.ShapeDtypeStruct((P, mid), jnp.float32),
    )(x2d, w1_groups, gamma, beta)


def _dw_kernel(x_ref, w_ref, o_ref, xpad_ref, *, stride):
    """3x3 depthwise conv, pad=1, stride folded in via strided ref reads."""
    _, H, W, C = x_ref.shape            # block (1, H, W, C)
    _, Ho, Wo, _ = o_ref.shape

    # zero-pad inside VMEM scratch (re-zeroed each step: no cross-iteration
    # state, so the batch grid axis can be "parallel" / megacore-sharded)
    xpad_ref[...] = jnp.zeros(xpad_ref.shape, xpad_ref.dtype)
    xpad_ref[:, 1:H + 1, 1:W + 1, :] = x_ref[...]
    w = w_ref[...]                      # (9, C)

    acc = jnp.zeros((1, Ho, Wo, C), jnp.float32)
    for kh in range(3):
        for kw in range(3):
            if stride == 1:
                tap = xpad_ref[:, kh:kh + Ho, kw:kw + Wo, :]
            else:  # stride 2: strided ref loads, no post-hoc subsample pass
                tap = xpad_ref[:, pl.ds(kh, Ho, 2), pl.ds(kw, Wo, 2), :]
            wk = w[kh * 3 + kw:kh * 3 + kw + 1, :].reshape(1, 1, 1, C)
            acc = acc + tap * wk
    o_ref[...] = acc


def dw_conv3x3(x_nhwc, w9c, stride):
    N, H, W, C = x_nhwc.shape
    Ho = (H - 1) // stride + 1
    Wo = (W - 1) // stride + 1
    return pl.pallas_call(
        functools.partial(_dw_kernel, stride=stride),
        grid=(N,),
        in_specs=[pl.BlockSpec((1, H, W, C), lambda n: (n, 0, 0, 0)),
                  pl.BlockSpec((9, C), lambda n: (0, 0))],
        out_specs=pl.BlockSpec((1, Ho, Wo, C), lambda n: (n, 0, 0, 0)),
        out_shape=jax.ShapeDtypeStruct((N, Ho, Wo, C), jnp.float32),
        scratch_shapes=[pltpu.VMEM((1, H + 2, W + 2, C), jnp.float32)],
        compiler_params=pltpu.CompilerParams(
            dimension_semantics=("parallel",)),
    )(x_nhwc, w9c)


def _pw3_kernel(z_ref, g2_ref, b2_ref, w3_ref, g3_ref, b3_ref, r_ref,
                *out_refs, mode, emit_preact):
    """BN2-apply + ReLU prologue -> conv3 (bf16, shuffle+groups folded into the
    dense weight) -> train-mode BN3 -> shortcut add/concat -> ReLU epilogue."""
    z = z_ref[...]                               # (P2, mid) pre-BN depthwise out
    m2 = jnp.mean(z, axis=0, keepdims=True)
    v2 = jnp.mean((z - m2) ** 2, axis=0, keepdims=True)
    zh = (z - m2) * lax.rsqrt(v2 + EPS) * g2_ref[...] + b2_ref[...]
    zh = jnp.maximum(zh, 0.0)

    y = jnp.dot(zh.astype(jnp.bfloat16), w3_ref[...],
                preferred_element_type=jnp.float32)              # MXU
    m3 = jnp.mean(y, axis=0, keepdims=True)
    v3 = jnp.mean((y - m3) ** 2, axis=0, keepdims=True)
    y = (y - m3) * lax.rsqrt(v3 + EPS) * g3_ref[...] + b3_ref[...]

    r = r_ref[...]
    out_ref = out_refs[0]
    if mode == "add":                      # identity shortcut (stride 1)
        pre = y + r
        out_ref[...] = jnp.maximum(pre, 0.0)
        if emit_preact:
            out_refs[1][...] = pre
    else:                                  # channel concat (stride 2)
        C1 = y.shape[-1]
        out_ref[:, :C1] = jnp.maximum(y, 0.0)
        out_ref[:, C1:] = jnp.maximum(r, 0.0)
        if emit_preact:
            out_refs[1][:, :C1] = y
            out_refs[1][:, C1:] = r


def pw3_fused(z2d, g2, b2, w3, g3, b3, res, mode, emit_preact):
    P2, _ = z2d.shape
    c_main = w3.shape[1]
    c_tot = c_main + (res.shape[1] if mode == "concat" else 0)
    out_shapes = [jax.ShapeDtypeStruct((P2, c_tot), jnp.float32)]
    if emit_preact:
        out_shapes.append(jax.ShapeDtypeStruct((P2, c_tot), jnp.float32))
    return pl.pallas_call(
        functools.partial(_pw3_kernel, mode=mode, emit_preact=emit_preact),
        in_specs=[_VMEM] * 7,
        out_specs=tuple([_VMEM] * len(out_shapes)),
        out_shape=tuple(out_shapes),
    )(z2d, g2, b2, w3, g3, b3, res)


# ------------------------------- glue helpers ------------------------------ #

def _prepare_params(params, cin, mid, out_planes, g1, groups):
    """Host/trace-time reshaping of the torch-layout weights.  The channel
    shuffle is absorbed here: depthwise taps + BN2 params are permuted to the
    natural (un-shuffled) conv1 output order, and conv3's grouped weight is
    scattered (with that permutation) into a dense (mid, out) matrix."""
    cin_g = cin // g1
    cout_g = mid // g1
    mid_g = mid // groups
    out_g = out_planes // groups

    # shuffle: shuffled channel c reads natural channel perm[c]
    perm = np.arange(mid).reshape(g1, cout_g).T.reshape(-1)
    inv_perm = np.argsort(perm)

    # conv1: (mid, cin_g, 1, 1) -> per-group (cin_g, cout_g) stack, bf16
    w1 = params['conv1_w'][:, :, 0, 0]
    w1_groups = jnp.stack(
        [w1[gi * cout_g:(gi + 1) * cout_g, :].T for gi in range(g1)], axis=0
    ).astype(jnp.bfloat16)

    # conv2 depthwise taps (9, mid), permuted to natural channel order
    w2 = jnp.transpose(params['conv2_w'][:, 0, :, :], (1, 2, 0)).reshape(9, mid)
    w2_nat = w2[:, inv_perm].astype(jnp.float32)

    # conv3: dense (mid, out) with grouping + shuffle folded in, bf16
    w3 = params['conv3_w'][:, :, 0, 0]            # (out, mid_g)
    w3_shuf = jnp.zeros((mid, out_planes), jnp.float32)
    for gj in range(groups):
        blk = w3[gj * out_g:(gj + 1) * out_g, :].T           # (mid_g, out_g)
        w3_shuf = w3_shuf.at[gj * mid_g:(gj + 1) * mid_g,
                             gj * out_g:(gj + 1) * out_g].set(blk)
    w3_nat = w3_shuf[inv_perm, :].astype(jnp.bfloat16)

    return {
        'w1_groups': w1_groups,
        'bn1_g': params['bn1_g'].reshape(1, mid).astype(jnp.float32),
        'bn1_b': params['bn1_b'].reshape(1, mid).astype(jnp.float32),
        'w2_nat': w2_nat,
        'bn2_g': params['bn2_g'][inv_perm].reshape(1, mid).astype(jnp.float32),
        'bn2_b': params['bn2_b'][inv_perm].reshape(1, mid).astype(jnp.float32),
        'w3_nat': w3_nat,
        'bn3_g': params['bn3_g'].reshape(1, out_planes).astype(jnp.float32),
        'bn3_b': params['bn3_b'].reshape(1, out_planes).astype(jnp.float32),
    }


@functools.partial(jax.jit, static_argnames=("stride", "groups", "is_last"))
def bottleneck_forward(x_nchw, params, stride, groups, is_last=False):
    N, Cin, H, W = x_nchw.shape
    mid = params['conv2_w'].shape[0]
    out_planes = params['conv3_w'].shape[0]
    g1 = 1 if Cin == 24 else groups
    Ho = (H - 1) // stride + 1
    Wo = (W - 1) // stride + 1
    P = N * H * W
    P2 = N * Ho * Wo

    prep = _prepare_params(params, Cin, mid, out_planes, g1, groups)

    x_nhwc = jnp.transpose(x_nchw, (0, 2, 3, 1)).astype(jnp.float32)
    x2d = x_nhwc.reshape(P, Cin)

    # K1: conv1 (per-group bf16 matmuls) + BN1 + ReLU  -> (P, mid)
    y1 = pw1_bn_relu(x2d, prep['w1_groups'], prep['bn1_g'], prep['bn1_b'])

    # K2: depthwise 3x3 (stride folded in, pad in VMEM) -> pre-BN z
    z_pre = dw_conv3x3(y1.reshape(N, H, W, mid), prep['w2_nat'], stride)

    # shortcut
    if stride == 1:
        res = x2d
        mode = "add"
    else:
        # AvgPool2d(3, stride=2, padding=1) == depthwise conv with 1/9 taps
        pool_w = jnp.full((9, Cin), 1.0 / 9.0, jnp.float32)
        pooled = dw_conv3x3(x_nhwc, pool_w, 2)
        res = pooled.reshape(P2, Cin)
        mode = "concat"

    # K3: BN2 + ReLU + conv3 + BN3 + shortcut + final ReLU (fused)
    outs = pw3_fused(z_pre.reshape(P2, mid),
                     prep['bn2_g'], prep['bn2_b'],
                     prep['w3_nat'], prep['bn3_g'], prep['bn3_b'],
                     res, mode=mode, emit_preact=is_last)

    c_final = outs[0].shape[-1]
    out_nchw = jnp.transpose(outs[0].reshape(N, Ho, Wo, c_final), (0, 3, 1, 2))
    if is_last:
        pre_nchw = jnp.transpose(outs[1].reshape(N, Ho, Wo, c_final), (0, 3, 1, 2))
        return out_nchw, pre_nchw
    return out_nchw


# ----------------------- pure-JAX reference (for checking) ----------------- #

def ref_bottleneck(x, params, stride, groups, is_last=False):
    Cin = x.shape[1]
    g1 = 1 if Cin == 24 else groups

    def conv(x, w, s, p, fg):
        return lax.conv_general_dilated(
            x, w, (s, s), [(p, p), (p, p)], feature_group_count=fg,
            dimension_numbers=('NCHW', 'OIHW', 'NCHW'))

    def bn(x, gamma, beta):
        mean = jnp.mean(x, axis=(0, 2, 3), keepdims=True)
        var = jnp.mean((x - mean) ** 2, axis=(0, 2, 3), keepdims=True)
        xn = (x - mean) / jnp.sqrt(var + EPS)
        return xn * gamma.reshape(1, -1, 1, 1) + beta.reshape(1, -1, 1, 1)

    def shuffle(x, g):
        N, C, H, W = x.shape
        return x.reshape(N, g, C // g, H, W).transpose(0, 2, 1, 3, 4).reshape(N, C, H, W)

    mid = params['conv2_w'].shape[0]
    out = jax.nn.relu(bn(conv(x, params['conv1_w'], 1, 0, g1),
                         params['bn1_g'], params['bn1_b']))
    out = shuffle(out, g1)
    out = jax.nn.relu(bn(conv(out, params['conv2_w'], stride, 1, mid),
                         params['bn2_g'], params['bn2_b']))
    out = bn(conv(out, params['conv3_w'], 1, 0, groups),
             params['bn3_g'], params['bn3_b'])
    if stride == 2:
        wpool = jnp.full((Cin, 1, 3, 3), 1.0 / 9.0, jnp.float32)
        res = conv(x, wpool, 2, 1, Cin)
        preact = jnp.concatenate([out, res], axis=1)
    else:
        preact = out + x
    o = jax.nn.relu(preact)
    return (o, preact) if is_last else o


# ------------------------------ param init --------------------------------- #

def init_params(key, in_planes, out_planes, groups):
    mid = out_planes // 4
    g1 = 1 if in_planes == 24 else groups
    ks = jax.random.split(key, 9)
    return {
        'conv1_w': 0.1 * jax.random.normal(ks[0], (mid, in_planes // g1, 1, 1), jnp.float32),
        'conv2_w': 0.1 * jax.random.normal(ks[1], (mid, 1, 3, 3), jnp.float32),
        'conv3_w': 0.1 * jax.random.normal(ks[2], (out_planes, mid // groups, 1, 1), jnp.float32),
        'bn1_g': 1.0 + 0.1 * jax.random.normal(ks[3], (mid,), jnp.float32),
        'bn1_b': 0.1 * jax.random.normal(ks[4], (mid,), jnp.float32),
        'bn2_g': 1.0 + 0.1 * jax.random.normal(ks[5], (mid,), jnp.float32),
        'bn2_b': 0.1 * jax.random.normal(ks[6], (mid,), jnp.float32),
        'bn3_g': 1.0 + 0.1 * jax.random.normal(ks[7], (out_planes,), jnp.float32),
        'bn3_b': 0.1 * jax.random.normal(ks[8], (out_planes,), jnp.float32),
    }


if __name__ == "__main__":
    key = jax.random.PRNGKey(0)
    kx, kp1, kp2 = jax.random.split(key, 3)

    N, H, W = 2, 8, 8
    in_planes, out_planes, groups = 16, 16, 2
    x = jax.random.normal(kx, (N, in_planes, H, W), jnp.float32)

    # bf16 MXU inputs -> compare against the f32 XLA reference with a looser
    # tolerance (structure / permutation bugs would show up as O(1) errors).
    RTOL = ATOL = 3e-2

    # Config A: stride=1 (identity shortcut, residual add), is_last=True
    params = init_params(kp1, in_planes, out_planes, groups)
    out, preact = bottleneck_forward(x, params, stride=1, groups=groups, is_last=True)
    jax.block_until_ready(out)
    ref_out, ref_pre = ref_bottleneck(x, params, 1, groups, is_last=True)
    assert out.shape == (N, out_planes, H, W)
    np.testing.assert_allclose(np.asarray(out), np.asarray(ref_out), rtol=RTOL, atol=ATOL)
    np.testing.assert_allclose(np.asarray(preact), np.asarray(ref_pre), rtol=RTOL, atol=ATOL)

    # Config B: stride=2 (AvgPool shortcut, channel concat)
    params2 = init_params(kp2, in_planes, out_planes, groups)
    out2 = bottleneck_forward(x, params2, stride=2, groups=groups, is_last=False)
    jax.block_until_ready(out2)
    ref_out2 = ref_bottleneck(x, params2, 2, groups, is_last=False)
    assert out2.shape == (N, out_planes + in_planes, H // 2, W // 2)
    np.testing.assert_allclose(np.asarray(out2), np.asarray(ref_out2), rtol=RTOL, atol=ATOL)

    print("KERNEL_OK")
</pallas_src>

<mosaic_0001>
module attributes {stable_mosaic.version = 11 : i64} {
  func.func @_pw1_kernel(%arg0: memref<128x16xf32, #tpu.memory_space<vmem>>, %arg1: memref<2x8x2xbf16, #tpu.memory_space<vmem>>, %arg2: memref<1x4xf32, #tpu.memory_space<vmem>>, %arg3: memref<1x4xf32, #tpu.memory_space<vmem>>, %arg4: memref<128x4xf32, #tpu.memory_space<vmem>>) attributes {dimension_semantics = [], scalar_prefetch = 0 : i64, scratch_operands = 0 : i64, tpu.core_type = #tpu.core_type<tc>} {
    %c0 = arith.constant 0 : index
    %c0_0 = arith.constant 0 : index
    %0 = vector.load %arg0[%c0, %c0_0] : memref<128x16xf32, #tpu.memory_space<vmem>>, vector<128x16xf32>
    %c0_1 = arith.constant 0 : index
    %c0_2 = arith.constant 0 : index
    %1 = vector.load %arg2[%c0_1, %c0_2] : memref<1x4xf32, #tpu.memory_space<vmem>>, vector<1x4xf32>
    %c0_3 = arith.constant 0 : index
    %c0_4 = arith.constant 0 : index
    %2 = vector.load %arg3[%c0_3, %c0_4] : memref<1x4xf32, #tpu.memory_space<vmem>>, vector<1x4xf32>
    %3 = vector.extract_strided_slice %0 {offsets = [0, 0], sizes = [128, 8], strides = [1, 1]} : vector<128x16xf32> to vector<128x8xf32>
    %4 = arith.truncf %3 : vector<128x8xf32> to vector<128x8xbf16>
    %c0_5 = arith.constant 0 : index
    %c0_6 = arith.constant 0 : index
    %c0_7 = arith.constant 0 : index
    %5 = vector.load %arg1[%c0_5, %c0_6, %c0_7] : memref<2x8x2xbf16, #tpu.memory_space<vmem>>, vector<1x8x2xbf16>
    %6 = vector.shape_cast %5 : vector<1x8x2xbf16> to vector<8x2xbf16>
    %cst = arith.constant dense<0.000000e+00> : vector<128x2xf32>
    %7 = tpu.matmul %4, %6, %cst {dimension_numbers = #tpu.dot_dimension_numbers<[1], [0], [0], [1], [0, 0, 1, 1], [], []>} : vector<128x8xbf16>, vector<8x2xbf16>, vector<128x2xf32> -> vector<128x2xf32>
    %cst_8 = arith.constant dense<0.000000e+00> : vector<2xf32>
    %8 = vector.multi_reduction <add>, %7, %cst_8 [0] : vector<128x2xf32> to vector<2xf32>
    %9 = vector.shape_cast %8 : vector<2xf32> to vector<1x2xf32>
    %cst_9 = arith.constant 1.280000e+02 : f32
    %10 = vector.broadcast %cst_9 : f32 to vector<1x2xf32>
    %11 = arith.divf %9, %10 : vector<1x2xf32>
    %12 = vector.broadcast %11 : vector<1x2xf32> to vector<128x2xf32>
    %13 = arith.subf %7, %12 : vector<128x2xf32>
    %14 = arith.mulf %13, %13 : vector<128x2xf32>
    %cst_10 = arith.constant dense<0.000000e+00> : vector<2xf32>
    %15 = vector.multi_reduction <add>, %14, %cst_10 [0] : vector<128x2xf32> to vector<2xf32>
    %16 = vector.shape_cast %15 : vector<2xf32> to vector<1x2xf32>
    %cst_11 = arith.constant 1.280000e+02 : f32
    %17 = vector.broadcast %cst_11 : f32 to vector<1x2xf32>
    %18 = arith.divf %16, %17 : vector<1x2xf32>
    %19 = vector.broadcast %11 : vector<1x2xf32> to vector<128x2xf32>
    %20 = arith.subf %7, %19 : vector<128x2xf32>
    %cst_12 = arith.constant 9.99999974E-6 : f32
    %21 = vector.broadcast %cst_12 : f32 to vector<1x2xf32>
    %22 = arith.addf %18, %21 : vector<1x2xf32>
    %23 = math.rsqrt %22 : vector<1x2xf32>
    %24 = vector.broadcast %23 : vector<1x2xf32> to vector<128x2xf32>
    %25 = arith.mulf %20, %24 : vector<128x2xf32>
    %26 = vector.extract_strided_slice %1 {offsets = [0, 0], sizes = [1, 2], strides = [1, 1]} : vector<1x4xf32> to vector<1x2xf32>
    %27 = vector.broadcast %26 : vector<1x2xf32> to vector<128x2xf32>
    %28 = arith.mulf %25, %27 : vector<128x2xf32>
    %29 = vector.extract_strided_slice %2 {offsets = [0, 0], sizes = [1, 2], strides = [1, 1]} : vector<1x4xf32> to vector<1x2xf32>
    %30 = vector.broadcast %29 : vector<1x2xf32> to vector<128x2xf32>
    %31 = arith.addf %28, %30 : vector<128x2xf32>
    %cst_13 = arith.constant 0.000000e+00 : f32
    %32 = vector.broadcast %cst_13 : f32 to vector<128x2xf32>
    %33 = arith.maximumf %31, %32 : vector<128x2xf32>
    %c0_14 = arith.constant 0 : index
    %c0_15 = arith.constant 0 : index
    %34 = vector.load %arg4[%c0_14, %c0_15] : memref<128x4xf32, #tpu.memory_space<vmem>>, vector<128x2xf32>
    tpu.vector_store %arg4[%c0_14, %c0_15], %33 {strides = array<i32>} : memref<128x4xf32, #tpu.memory_space<vmem>>, vector<128x2xf32>,
    %35 = vector.extract_strided_slice %0 {offsets = [0, 8], sizes = [128, 8], strides = [1, 1]} : vector<128x16xf32> to vector<128x8xf32>
    %36 = arith.truncf %35 : vector<128x8xf32> to vector<128x8xbf16>
    %c1 = arith.constant 1 : index
    %c0_16 = arith.constant 0 : index
    %c0_17 = arith.constant 0 : index
    %37 = vector.load %arg1[%c1, %c0_16, %c0_17] : memref<2x8x2xbf16, #tpu.memory_space<vmem>>, vector<1x8x2xbf16>
    %38 = vector.shape_cast %37 : vector<1x8x2xbf16> to vector<8x2xbf16>
    %cst_18 = arith.constant dense<0.000000e+00> : vector<128x2xf32>
    %39 = tpu.matmul %36, %38, %cst_18 {dimension_numbers = #tpu.dot_dimension_numbers<[1], [0], [0], [1], [0, 0, 1, 1], [], []>} : vector<128x8xbf16>, vector<8x2xbf16>, vector<128x2xf32> -> vector<128x2xf32>
    %cst_19 = arith.constant dense<0.000000e+00> : vector<2xf32>
    %40 = vector.multi_reduction <add>, %39, %cst_19 [0] : vector<128x2xf32> to vector<2xf32>
    %41 = vector.shape_cast %40 : vector<2xf32> to vector<1x2xf32>
    %cst_20 = arith.constant 1.280000e+02 : f32
    %42 = vector.broadcast %cst_20 : f32 to vector<1x2xf32>
    %43 = arith.divf %41, %42 : vector<1x2xf32>
    %44 = vector.broadcast %43 : vector<1x2xf32> to vector<128x2xf32>
    %45 = arith.subf %39, %44 : vector<128x2xf32>
    %46 = arith.mulf %45, %45 : vector<128x2xf32>
    %cst_21 = arith.constant dense<0.000000e+00> : vector<2xf32>
    %47 = vector.multi_reduction <add>, %46, %cst_21 [0] : vector<128x2xf32> to vector<2xf32>
    %48 = vector.shape_cast %47 : vector<2xf32> to vector<1x2xf32>
    %cst_22 = arith.constant 1.280000e+02 : f32
    %49 = vector.broadcast %cst_22 : f32 to vector<1x2xf32>
    %50 = arith.divf %48, %49 : vector<1x2xf32>
    %51 = vector.broadcast %43 : vector<1x2xf32> to vector<128x2xf32>
    %52 = arith.subf %39, %51 : vector<128x2xf32>
    %cst_23 = arith.constant 9.99999974E-6 : f32
    %53 = vector.broadcast %cst_23 : f32 to vector<1x2xf32>
    %54 = arith.addf %50, %53 : vector<1x2xf32>
    %55 = math.rsqrt %54 : vector<1x2xf32>
    %56 = vector.broadcast %55 : vector<1x2xf32> to vector<128x2xf32>
    %57 = arith.mulf %52, %56 : vector<128x2xf32>
    %58 = vector.extract_strided_slice %1 {offsets = [0, 2], sizes = [1, 2], strides = [1, 1]} : vector<1x4xf32> to vector<1x2xf32>
    %59 = vector.broadcast %58 : vector<1x2xf32> to vector<128x2xf32>
    %60 = arith.mulf %57, %59 : vector<128x2xf32>
    %61 = vector.extract_strided_slice %2 {offsets = [0, 2], sizes = [1, 2], strides = [1, 1]} : vector<1x4xf32> to vector<1x2xf32>
    %62 = vector.broadcast %61 : vector<1x2xf32> to vector<128x2xf32>
    %63 = arith.addf %60, %62 : vector<128x2xf32>
    %cst_24 = arith.constant 0.000000e+00 : f32
    %64 = vector.broadcast %cst_24 : f32 to vector<128x2xf32>
    %65 = arith.maximumf %63, %64 : vector<128x2xf32>
    %c0_25 = arith.constant 0 : index
    %c2 = arith.constant 2 : index
    %66 = vector.load %arg4[%c0_25, %c2] : memref<128x4xf32, #tpu.memory_space<vmem>>, vector<128x2xf32>
    tpu.vector_store %arg4[%c0_25, %c2], %65 {strides = array<i32>} : memref<128x4xf32, #tpu.memory_space<vmem>>, vector<128x2xf32>,
    return
  }
}

module attributes {stable_mosaic.version = 11 : i64} {
  func.func @_dw_kernel(%arg0: i32, %arg1: memref<1x8x8x4xf32, #tpu.memory_space<vmem>>, %arg2: memref<9x4xf32, #tpu.memory_space<vmem>>, %arg3: memref<1x8x8x4xf32, #tpu.memory_space<vmem>>, %arg4: memref<1x10x10x4xf32, #tpu.memory_space<vmem>>) attributes {dimension_semantics = [#tpu.dimension_semantics<parallel>], iteration_bounds = array<i64: 2>, scalar_prefetch = 0 : i64, scratch_operands = 1 : i64, tpu.core_type = #tpu.core_type<tc>, window_params = [{transform_indices = @transform_0, window_bounds = array<i64: 1, 8, 8, 4>}, {pipeline_mode = #tpu.pipeline_mode<synchronous>, transform_indices = @transform_1, window_bounds = array<i64: 9, 4>}, {transform_indices = @transform_2, window_bounds = array<i64: 1, 8, 8, 4>}]} {
    %cst = arith.constant 0.000000e+00 : f32
    %0 = vector.broadcast %cst : f32 to vector<1x10x10x4xf32>
    %c0 = arith.constant 0 : index
    %c0_0 = arith.constant 0 : index
    %c0_1 = arith.constant 0 : index
    %c0_2 = arith.constant 0 : index
    %1 = vector.load %arg4[%c0, %c0_0, %c0_1, %c0_2] : memref<1x10x10x4xf32, #tpu.memory_space<vmem>>, vector<1x10x10x4xf32>
    tpu.vector_store %arg4[%c0, %c0_0, %c0_1, %c0_2], %0 {strides = array<i32>} : memref<1x10x10x4xf32, #tpu.memory_space<vmem>>, vector<1x10x10x4xf32>,
    %c0_3 = arith.constant 0 : index
    %c0_4 = arith.constant 0 : index
    %c0_5 = arith.constant 0 : index
    %c0_6 = arith.constant 0 : index
    %2 = vector.load %arg1[%c0_3, %c0_4, %c0_5, %c0_6] : memref<1x8x8x4xf32, #tpu.memory_space<vmem>>, vector<1x8x8x4xf32>
    %c0_7 = arith.constant 0 : index
    %c1 = arith.constant 1 : index
    %c1_8 = arith.constant 1 : index
    %c0_9 = arith.constant 0 : index
    %3 = vector.load %arg4[%c0_7, %c1, %c1_8, %c0_9] : memref<1x10x10x4xf32, #tpu.memory_space<vmem>>, vector<1x8x8x4xf32>
    tpu.vector_store %arg4[%c0_7, %c1, %c1_8, %c0_9], %2 {strides = array<i32>} : memref<1x10x10x4xf32, #tpu.memory_space<vmem>>, vector<1x8x8x4xf32>,
    %c0_10 = arith.constant 0 : index
    %c0_11 = arith.constant 0 : index
    %4 = vector.load %arg2[%c0_10, %c0_11] : memref<9x4xf32, #tpu.memory_space<vmem>>, vector<9x4xf32>
    %cst_12 = arith.constant 0.000000e+00 : f32
    %5 = vector.broadcast %cst_12 : f32 to vector<1x8x8x4xf32>
    %c0_13 = arith.constant 0 : index
    %c0_14 = arith.constant 0 : index
    %c0_15 = arith.constant 0 : index
    %c0_16 = arith.constant 0 : index
    %6 = vector.load %arg4[%c0_13, %c0_14, %c0_15, %c0_16] : memref<1x10x10x4xf32, #tpu.memory_space<vmem>>, vector<1x8x8x4xf32>
    %7 = vector.extract_strided_slice %4 {offsets = [0, 0], sizes = [1, 4], strides = [1, 1]} : vector<9x4xf32> to vector<1x4xf32>
    %8 = vector.shape_cast %7 : vector<1x4xf32> to vector<1x1x1x4xf32>
    %9 = vector.broadcast %8 : vector<1x1x1x4xf32> to vector<1x8x8x4xf32>
    %10 = arith.mulf %6, %9 : vector<1x8x8x4xf32>
    %11 = arith.addf %5, %10 : vector<1x8x8x4xf32>
    %c0_17 = arith.constant 0 : index
    %c0_18 = arith.constant 0 : index
    %c1_19 = arith.constant 1 : index
    %c0_20 = arith.constant 0 : index
    %12 = vector.load %arg4[%c0_17, %c0_18, %c1_19, %c0_20] : memref<1x10x10x4xf32, #tpu.memory_space<vmem>>, vector<1x8x8x4xf32>
    %13 = vector.extract_strided_slice %4 {offsets = [1, 0], sizes = [1, 4], strides = [1, 1]} : vector<9x4xf32> to vector<1x4xf32>
    %14 = vector.shape_cast %13 : vector<1x4xf32> to vector<1x1x1x4xf32>
    %15 = vector.broadcast %14 : vector<1x1x1x4xf32> to vector<1x8x8x4xf32>
    %16 = arith.mulf %12, %15 : vector<1x8x8x4xf32>
    %17 = arith.addf %11, %16 : vector<1x8x8x4xf32>
    %c0_21 = arith.constant 0 : index
    %c0_22 = arith.constant 0 : index
    %c2 = arith.constant 2 : index
    %c0_23 = arith.constant 0 : index
    %18 = vector.load %arg4[%c0_21, %c0_22, %c2, %c0_23] : memref<1x10x10x4xf32, #tpu.memory_space<vmem>>, vector<1x8x8x4xf32>
    %19 = vector.extract_strided_slice %4 {offsets = [2, 0], sizes = [1, 4], strides = [1, 1]} : vector<9x4xf32> to vector<1x4xf32>
    %20 = vector.shape_cast %19 : vector<1x4xf32> to vector<1x1x1x4xf32>
    %21 = vector.broadcast %20 : vector<1x1x1x4xf32> to vector<1x8x8x4xf32>
    %22 = arith.mulf %18, %21 : vector<1x8x8x4xf32>
    %23 = arith.addf %17, %22 : vector<1x8x8x4xf32>
    %c0_24 = arith.constant 0 : index
    %c1_25 = arith.constant 1 : index
    %c0_26 = arith.constant 0 : index
    %c0_27 = arith.constant 0 : index
    %24 = vector.load %arg4[%c0_24, %c1_25, %c0_26, %c0_27] : memref<1x10x10x4xf32, #tpu.memory_space<vmem>>, vector<1x8x8x4xf32>
    %25 = vector.extract_strided_slice %4 {offsets = [3, 0], sizes = [1, 4], strides = [1, 1]} : vector<9x4xf32> to vector<1x4xf32>
    %26 = vector.shape_cast %25 : vector<1x4xf32> to vector<1x1x1x4xf32>
    %27 = vector.broadcast %26 : vector<1x1x1x4xf32> to vector<1x8x8x4xf32>
    %28 = arith.mulf %24, %27 : vector<1x8x8x4xf32>
    %29 = arith.addf %23, %28 : vector<1x8x8x4xf32>
    %c0_28 = arith.constant 0 : index
    %c1_29 = arith.constant 1 : index
    %c1_30 = arith.constant 1 : index
    %c0_31 = arith.constant 0 : index
    %30 = vector.load %arg4[%c0_28, %c1_29, %c1_30, %c0_31] : memref<1x10x10x4xf32, #tpu.memory_space<vmem>>, vector<1x8x8x4xf32>
    %31 = vector.extract_strided_slice %4 {offsets = [4, 0], sizes = [1, 4], strides = [1, 1]} : vector<9x4xf32> to vector<1x4xf32>
    %32 = vector.shape_cast %31 : vector<1x4xf32> to vector<1x1x1x4xf32>
    %33 = vector.broadcast %32 : vector<1x1x1x4xf32> to vector<1x8x8x4xf32>
    %34 = arith.mulf %30, %33 : vector<1x8x8x4xf32>
    %35 = arith.addf %29, %34 : vector<1x8x8x4xf32>
    %c0_32 = arith.constant 0 : index
    %c1_33 = arith.constant 1 : index
    %c2_34 = arith.constant 2 : index
    %c0_35 = arith.constant 0 : index
    %36 = vector.load %arg4[%c0_32, %c1_33, %c2_34, %c0_35] : memref<1x10x10x4xf32, #tpu.memory_space<vmem>>, vector<1x8x8x4xf32>
    %37 = vector.extract_strided_slice %4 {offsets = [5, 0], sizes = [1, 4], strides = [1, 1]} : vector<9x4xf32> to vector<1x4xf32>
    %38 = vector.shape_cast %37 : vector<1x4xf32> to vector<1x1x1x4xf32>
    %39 = vector.broadcast %38 : vector<1x1x1x4xf32> to vector<1x8x8x4xf32>
    %40 = arith.mulf %36, %39 : vector<1x8x8x4xf32>
    %41 = arith.addf %35, %40 : vector<1x8x8x4xf32>
    %c0_36 = arith.constant 0 : index
    %c2_37 = arith.constant 2 : index
    %c0_38 = arith.constant 0 : index
    %c0_39 = arith.constant 0 : index
    %42 = vector.load %arg4[%c0_36, %c2_37, %c0_38, %c0_39] : memref<1x10x10x4xf32, #tpu.memory_space<vmem>>, vector<1x8x8x4xf32>
    %43 = vector.extract_strided_slice %4 {offsets = [6, 0], sizes = [1, 4], strides = [1, 1]} : vector<9x4xf32> to vector<1x4xf32>
    %44 = vector.shape_cast %43 : vector<1x4xf32> to vector<1x1x1x4xf32>
    %45 = vector.broadcast %44 : vector<1x1x1x4xf32> to vector<1x8x8x4xf32>
    %46 = arith.mulf %42, %45 : vector<1x8x8x4xf32>
    %47 = arith.addf %41, %46 : vector<1x8x8x4xf32>
    %c0_40 = arith.constant 0 : index
    %c2_41 = arith.constant 2 : index
    %c1_42 = arith.constant 1 : index
    %c0_43 = arith.constant 0 : index
    %48 = vector.load %arg4[%c0_40, %c2_41, %c1_42, %c0_43] : memref<1x10x10x4xf32, #tpu.memory_space<vmem>>, vector<1x8x8x4xf32>
    %49 = vector.extract_strided_slice %4 {offsets = [7, 0], sizes = [1, 4], strides = [1, 1]} : vector<9x4xf32> to vector<1x4xf32>
    %50 = vector.shape_cast %49 : vector<1x4xf32> to vector<1x1x1x4xf32>
    %51 = vector.broadcast %50 : vector<1x1x1x4xf32> to vector<1x8x8x4xf32>
    %52 = arith.mulf %48, %51 : vector<1x8x8x4xf32>
    %53 = arith.addf %47, %52 : vector<1x8x8x4xf32>
    %c0_44 = arith.constant 0 : index
    %c2_45 = arith.constant 2 : index
    %c2_46 = arith.constant 2 : index
    %c0_47 = arith.constant 0 : index
    %54 = vector.load %arg4[%c0_44, %c2_45, %c2_46, %c0_47] : memref<1x10x10x4xf32, #tpu.memory_space<vmem>>, vector<1x8x8x4xf32>
    %55 = vector.extract_strided_slice %4 {offsets = [8, 0], sizes = [1, 4], strides = [1, 1]} : vector<9x4xf32> to vector<1x4xf32>
    %56 = vector.shape_cast %55 : vector<1x4xf32> to vector<1x1x1x4xf32>
    %57 = vector.broadcast %56 : vector<1x1x1x4xf32> to vector<1x8x8x4xf32>
    %58 = arith.mulf %54, %57 : vector<1x8x8x4xf32>
    %59 = arith.addf %53, %58 : vector<1x8x8x4xf32>
    %c0_48 = arith.constant 0 : index
    %c0_49 = arith.constant 0 : index
    %c0_50 = arith.constant 0 : index
    %c0_51 = arith.constant 0 : index
    %60 = vector.load %arg3[%c0_48, %c0_49, %c0_50, %c0_51] : memref<1x8x8x4xf32, #tpu.memory_space<vmem>>, vector<1x8x8x4xf32>
    tpu.vector_store %arg3[%c0_48, %c0_49, %c0_50, %c0_51], %59 {strides = array<i32>} : memref<1x8x8x4xf32, #tpu.memory_space<vmem>>, vector<1x8x8x4xf32>,
    return
  }
  func.func @transform_0(%arg0: i32) -> (i32, i32, i32, i32) {
    %c0_i32 = arith.constant 0 : i32
    %c0_i32_0 = arith.constant 0 : i32
    %c0_i32_1 = arith.constant 0 : i32
    %c0_i32_2 = arith.constant 0 : i32
    return %arg0, %c0_i32, %c0_i32_0, %c0_i32_1 : i32, i32, i32, i32
  }
  func.func @transform_1(%arg0: i32) -> (i32, i32) {
    %c0_i32 = arith.constant 0 : i32
    %c0_i32_0 = arith.constant 0 : i32
    %c0_i32_1 = arith.constant 0 : i32
    return %c0_i32, %c0_i32_0 : i32, i32
  }
  func.func @transform_2(%arg0: i32) -> (i32, i32, i32, i32) {
    %c0_i32 = arith.constant 0 : i32
    %c0_i32_0 = arith.constant 0 : i32
    %c0_i32_1 = arith.constant 0 : i32
    %c0_i32_2 = arith.constant 0 : i32
    return %arg0, %c0_i32, %c0_i32_0, %c0_i32_1 : i32, i32, i32, i32
  }
}

module attributes {stable_mosaic.version = 11 : i64} {
  func.func @_pw3_kernel(%arg0: memref<128x4xf32, #tpu.memory_space<vmem>>, %arg1: memref<1x4xf32, #tpu.memory_space<vmem>>, %arg2: memref<1x4xf32, #tpu.memory_space<vmem>>, %arg3: memref<4x16xbf16, #tpu.memory_space<vmem>>, %arg4: memref<1x16xf32, #tpu.memory_space<vmem>>, %arg5: memref<1x16xf32, #tpu.memory_space<vmem>>, %arg6: memref<128x16xf32, #tpu.memory_space<vmem>>, %arg7: memref<128x16xf32, #tpu.memory_space<vmem>>, %arg8: memref<128x16xf32, #tpu.memory_space<vmem>>) attributes {dimension_semantics = [], scalar_prefetch = 0 : i64, scratch_operands = 0 : i64, tpu.core_type = #tpu.core_type<tc>} {
    %c0 = arith.constant 0 : index
    %c0_0 = arith.constant 0 : index
    %0 = vector.load %arg0[%c0, %c0_0] : memref<128x4xf32, #tpu.memory_space<vmem>>, vector<128x4xf32>
    %cst = arith.constant dense<0.000000e+00> : vector<4xf32>
    %1 = vector.multi_reduction <add>, %0, %cst [0] : vector<128x4xf32> to vector<4xf32>
    %2 = vector.shape_cast %1 : vector<4xf32> to vector<1x4xf32>
    %cst_1 = arith.constant 1.280000e+02 : f32
    %3 = vector.broadcast %cst_1 : f32 to vector<1x4xf32>
    %4 = arith.divf %2, %3 : vector<1x4xf32>
    %5 = vector.broadcast %4 : vector<1x4xf32> to vector<128x4xf32>
    %6 = arith.subf %0, %5 : vector<128x4xf32>
    %7 = arith.mulf %6, %6 : vector<128x4xf32>
    %cst_2 = arith.constant dense<0.000000e+00> : vector<4xf32>
    %8 = vector.multi_reduction <add>, %7, %cst_2 [0] : vector<128x4xf32> to vector<4xf32>
    %9 = vector.shape_cast %8 : vector<4xf32> to vector<1x4xf32>
    %cst_3 = arith.constant 1.280000e+02 : f32
    %10 = vector.broadcast %cst_3 : f32 to vector<1x4xf32>
    %11 = arith.divf %9, %10 : vector<1x4xf32>
    %12 = vector.broadcast %4 : vector<1x4xf32> to vector<128x4xf32>
    %13 = arith.subf %0, %12 : vector<128x4xf32>
    %cst_4 = arith.constant 9.99999974E-6 : f32
    %14 = vector.broadcast %cst_4 : f32 to vector<1x4xf32>
    %15 = arith.addf %11, %14 : vector<1x4xf32>
    %16 = math.rsqrt %15 : vector<1x4xf32>
    %17 = vector.broadcast %16 : vector<1x4xf32> to vector<128x4xf32>
    %18 = arith.mulf %13, %17 : vector<128x4xf32>
    %c0_5 = arith.constant 0 : index
    %c0_6 = arith.constant 0 : index
    %19 = vector.load %arg1[%c0_5, %c0_6] : memref<1x4xf32, #tpu.memory_space<vmem>>, vector<1x4xf32>
    %20 = vector.broadcast %19 : vector<1x4xf32> to vector<128x4xf32>
    %21 = arith.mulf %18, %20 : vector<128x4xf32>
    %c0_7 = arith.constant 0 : index
    %c0_8 = arith.constant 0 : index
    %22 = vector.load %arg2[%c0_7, %c0_8] : memref<1x4xf32, #tpu.memory_space<vmem>>, vector<1x4xf32>
    %23 = vector.broadcast %22 : vector<1x4xf32> to vector<128x4xf32>
    %24 = arith.addf %21, %23 : vector<128x4xf32>
    %cst_9 = arith.constant 0.000000e+00 : f32
    %25 = vector.broadcast %cst_9 : f32 to vector<128x4xf32>
    %26 = arith.maximumf %24, %25 : vector<128x4xf32>
    %27 = arith.truncf %26 : vector<128x4xf32> to vector<128x4xbf16>
    %c0_10 = arith.constant 0 : index
    %c0_11 = arith.constant 0 : index
    %28 = vector.load %arg3[%c0_10, %c0_11] : memref<4x16xbf16, #tpu.memory_space<vmem>>, vector<4x16xbf16>
    %cst_12 = arith.constant dense<0.000000e+00> : vector<128x16xf32>
    %29 = tpu.matmul %27, %28, %cst_12 {dimension_numbers = #tpu.dot_dimension_numbers<[1], [0], [0], [1], [0, 0, 1, 1], [], []>} : vector<128x4xbf16>, vector<4x16xbf16>, vector<128x16xf32> -> vector<128x16xf32>
    %cst_13 = arith.constant dense<0.000000e+00> : vector<16xf32>
    %30 = vector.multi_reduction <add>, %29, %cst_13 [0] : vector<128x16xf32> to vector<16xf32>
    %31 = vector.shape_cast %30 : vector<16xf32> to vector<1x16xf32>
    %cst_14 = arith.constant 1.280000e+02 : f32
    %32 = vector.broadcast %cst_14 : f32 to vector<1x16xf32>
    %33 = arith.divf %31, %32 : vector<1x16xf32>
    %34 = vector.broadcast %33 : vector<1x16xf32> to vector<128x16xf32>
    %35 = arith.subf %29, %34 : vector<128x16xf32>
    %36 = arith.mulf %35, %35 : vector<128x16xf32>
    %cst_15 = arith.constant dense<0.000000e+00> : vector<16xf32>
    %37 = vector.multi_reduction <add>, %36, %cst_15 [0] : vector<128x16xf32> to vector<16xf32>
    %38 = vector.shape_cast %37 : vector<16xf32> to vector<1x16xf32>
    %cst_16 = arith.constant 1.280000e+02 : f32
    %39 = vector.broadcast %cst_16 : f32 to vector<1x16xf32>
    %40 = arith.divf %38, %39 : vector<1x16xf32>
    %41 = vector.broadcast %33 : vector<1x16xf32> to vector<128x16xf32>
    %42 = arith.subf %29, %41 : vector<128x16xf32>
    %cst_17 = arith.constant 9.99999974E-6 : f32
    %43 = vector.broadcast %cst_17 : f32 to vector<1x16xf32>
    %44 = arith.addf %40, %43 : vector<1x16xf32>
    %45 = math.rsqrt %44 : vector<1x16xf32>
    %46 = vector.broadcast %45 : vector<1x16xf32> to vector<128x16xf32>
    %47 = arith.mulf %42, %46 : vector<128x16xf32>
    %c0_18 = arith.constant 0 : index
    %c0_19 = arith.constant 0 : index
    %48 = vector.load %arg4[%c0_18, %c0_19] : memref<1x16xf32, #tpu.memory_space<vmem>>, vector<1x16xf32>
    %49 = vector.broadcast %48 : vector<1x16xf32> to vector<128x16xf32>
    %50 = arith.mulf %47, %49 : vector<128x16xf32>
    %c0_20 = arith.constant 0 : index
    %c0_21 = arith.constant 0 : index
    %51 = vector.load %arg5[%c0_20, %c0_21] : memref<1x16xf32, #tpu.memory_space<vmem>>, vector<1x16xf32>
    %52 = vector.broadcast %51 : vector<1x16xf32> to vector<128x16xf32>
    %53 = arith.addf %50, %52 : vector<128x16xf32>
    %c0_22 = arith.constant 0 : index
    %c0_23 = arith.constant 0 : index
    %54 = vector.load %arg6[%c0_22, %c0_23] : memref<128x16xf32, #tpu.memory_space<vmem>>, vector<128x16xf32>
    %55 = arith.addf %53, %54 : vector<128x16xf32>
    %cst_24 = arith.constant 0.000000e+00 : f32
    %56 = vector.broadcast %cst_24 : f32 to vector<128x16xf32>
    %57 = arith.maximumf %55, %56 : vector<128x16xf32>
    %c0_25 = arith.constant 0 : index
    %c0_26 = arith.constant 0 : index
    %58 = vector.load %arg7[%c0_25, %c0_26] : memref<128x16xf32, #tpu.memory_space<vmem>>, vector<128x16xf32>
    tpu.vector_store %arg7[%c0_25, %c0_26], %57 {strides = array<i32>} : memref<128x16xf32, #tpu.memory_space<vmem>>, vector<128x16xf32>,
    %c0_27 = arith.constant 0 : index
    %c0_28 = arith.constant 0 : index
    %59 = vector.load %arg8[%c0_27, %c0_28] : memref<128x16xf32, #tpu.memory_space<vmem>>, vector<128x16xf32>
    tpu.vector_store %arg8[%c0_27, %c0_28], %55 {strides = array<i32>} : memref<128x16xf32, #tpu.memory_space<vmem>>, vector<128x16xf32>,
    return
  }
}

</mosaic_0001>

<llo_original>
// kernel: bottleneck_forward.4
$region0: #{bottleneck_forward.4}
  #allocation0 [shape = 'u32[]', space=smem, size = 0x4, offset = 0x4, fixed_abs, tag = 'smem constant byte address 0x4 - core index']
  #allocation1 [shape = 'u32[72,128]{1,0:T(1,128)}', space=vmem, size = 0x9000, scoped, tag = 'internal scratch']
  #allocation2 [shape = 'f32[1,10,10,4]{3,2,1,0:T(8,128)}', space=vmem, size = 0x14000, scoped, tag = 'scratch operand']
  %s0 = inlined_call_operand.vmem [shape: f32[2,8,8,4], index: 0, kind: input, shape index: {}]
  %s1 = inlined_call_operand.vmem [shape: f32[9,4], index: 1, kind: input, shape index: {}]
  %s2 = inlined_call_operand.vmem [shape: f32[2,8,8,4], index: 2, kind: output, shape index: {}]
  %s3 = sld [smem:[#allocation0]]
  $region41: #{bottleneck_forward.4} parent=0
    _
  %s5 = ssub.s32 1, %s3
  %s6 = scalar_select 0, %s5, %s3
  loop: start=0, step=1, limit=4
  $region2: #{bottleneck_forward.4} parent=0 // loop_pre_header
    _
  $region3: #{bottleneck_forward.4} parent=0 // loop_header
    %s8 = sphi 0, %s12
    %p9 = scmp.ge.s32.totalorder %s8, 4
    %s18 = sphi 0, %s20
    %s21 = sphi 0, %s18
    %s22 = sphi 0, %s21
    %s38 = sphi 0, %s22
    %s42 = sphi 0, %s42
    %s44 = sphi 0, %s42
    %s45 = sphi 0, %s44
    %s59 = sphi 0, %s45
    %s65 = sphi 0, %s67
    %s68 = sphi 0, %s65
    %s69 = sphi 0, %s68
    %s85 = sphi 0, %s69
  $region4: #{bottleneck_forward.4} parent=0 // loop_header_branch
    %11 = sbr.rel (%p9) target = $region8
  $region5: #{bottleneck_forward.4} parent=0 // loop_body
    %s13 = ssub.s32 %s8, 1
    %s14 = ssub.s32 %s8, 2
    %s15 = sadd.s32 %s8, 1
    %s16 = ssub.s32 %s8, %s15
    %p17 = scmp.eq.s32.totalorder %s16, 0
    %s19 = sadd.s32 %s18, 1
    %s20 = scalar_select %p17, %s18, %s19
    %p23 = pneg %p17
    %p24 = scmp.eq.s32.totalorder %s8, 1
    %p25 = por %p23, %p24
    %p26 = scmp.ne.s32.totalorder %s18, %s21
    %p27 = scmp.eq.s32.totalorder %s8, 0
    %p28 = por %p26, %p27
    %p29 = scmp.ne.s32.totalorder %s18, %s21
    %p30 = scmp.eq.s32.totalorder %s13, 1
    %p31 = por %p29, %p30
    %p32 = scmp.ne.s32.totalorder %s21, %s22
    %p33 = scmp.eq.s32.totalorder %s13, 0
    %p34 = por %p32, %p33
    %p35 = scmp.ne.s32.totalorder %s21, %s22
    %p36 = scmp.eq.s32.totalorder %s14, 1
    %p37 = por %p35, %p36
    %p39 = scmp.ne.s32.totalorder %s22, %s38
    %p40 = scmp.eq.s32.totalorder %s14, 0
    %p41 = por %p39, %p40
    %s43 = sadd.s32 %s42, 1
    %p46 = scmp.eq.s32.totalorder %s8, 1
    %p47 = scmp.ne.s32.totalorder %s42, %s44
    %p48 = scmp.eq.s32.totalorder %s8, 0
    %p49 = por %p47, %p48
    %p50 = scmp.ne.s32.totalorder %s42, %s44
    %p51 = scmp.eq.s32.totalorder %s13, 1
    %p52 = por %p50, %p51
    %p53 = scmp.ne.s32.totalorder %s44, %s45
    %p54 = scmp.eq.s32.totalorder %s13, 0
    %p55 = por %p53, %p54
    %p56 = scmp.ne.s32.totalorder %s44, %s45
    %p57 = scmp.eq.s32.totalorder %s14, 1
    %p58 = por %p56, %p57
    %p60 = scmp.ne.s32.totalorder %s45, %s59
    %p61 = scmp.eq.s32.totalorder %s14, 0
    %p62 = por %p60, %p61
    %s63 = ssub.s32 %s8, %s15
    %p64 = scmp.eq.s32.totalorder %s63, 0
    %s66 = sadd.s32 %s65, 1
    %s67 = scalar_select %p64, %s65, %s66
    %p70 = pneg %p64
    %p71 = scmp.eq.s32.totalorder %s8, 1
    %p72 = por %p70, %p71
    %p73 = scmp.ne.s32.totalorder %s65, %s68
    %p74 = scmp.eq.s32.totalorder %s8, 0
    %p75 = por %p73, %p74
    %p76 = scmp.ne.s32.totalorder %s65, %s68
    %p77 = scmp.eq.s32.totalorder %s13, 1
    %p78 = por %p76, %p77
    %p79 = scmp.ne.s32.totalorder %s68, %s69
    %p80 = scmp.eq.s32.totalorder %s13, 0
    %p81 = por %p79, %p80
    %p82 = scmp.ne.s32.totalorder %s68, %s69
    %p83 = scmp.eq.s32.totalorder %s14, 1
    %p84 = por %p82, %p83
    %p86 = scmp.ne.s32.totalorder %s69, %s85
    %p87 = scmp.eq.s32.totalorder %s14, 0
    %p88 = por %p86, %p87
    %p89 = scmp.le.s32.totalorder 1, %s8
    %p90 = scmp.lt.s32.totalorder %s8, 3
    %p91 = pnand %p89, %p90
    %p92 = pneg %p91
    // Predicated region
    $region9: #{bottleneck_forward.4} parent=5 // pred_check
      _
    $region10: #{bottleneck_forward.4} parent=5 // pred_check_branch
      %94 = sbr.rel (%p91) target = $region12
    $region11: #{bottleneck_forward.4} parent=5 // pred_region
      %s95 = ssub.s32 %s8, 1
      // Predicated region
      $region13: #{bottleneck_forward.4} parent=11 // pred_check
        %p96 = pneg %p55
      $region14: #{bottleneck_forward.4} parent=11 // pred_check_branch
        %98 = sbr.rel (%p96) target = $region16
      $region15: #{bottleneck_forward.4} parent=11 // pred_region
        _
      $region16: #{bottleneck_forward.4} parent=11 // pred_fallthru
        _
    $region12: #{bottleneck_forward.4} parent=5 // pred_fallthru
      _
    %p99 = scmp.lt.s32.totalorder %s8, 2
    // Predicated region
    $region17: #{bottleneck_forward.4} parent=5 // pred_check
      %p100 = pneg %p99
    $region18: #{bottleneck_forward.4} parent=5 // pred_check_branch
      %102 = sbr.rel (%p100) target = $region20
    $region19: #{bottleneck_forward.4} parent=5 // pred_region
      // Predicated region
      $region21: #{bottleneck_forward.4} parent=19 // pred_check
        %p103 = pneg %p28
      $region22: #{bottleneck_forward.4} parent=19 // pred_check_branch
        %105 = sbr.rel (%p103) target = $region24
      $region23: #{bottleneck_forward.4} parent=19 // pred_region
        %p106 = scmp.lt.s32.totalorder %s8, 1
        %s107 = scalar_select %p106, %s8, 1
        %s108 = smul.addr %s107, 8
        %s109 = smul.addr %s108, 8
        %s110 = scalar_lea.vmem %s0, %s109
      $region24: #{bottleneck_forward.4} parent=19 // pred_fallthru
        _
    $region20: #{bottleneck_forward.4} parent=5 // pred_fallthru
      _
    %p111 = scmp.le.s32.totalorder 1, %s8
    %p112 = scmp.lt.s32.totalorder %s8, 3
    %p113 = pnand %p111, %p112
    %p114 = pneg %p113
    // Predicated region
    $region25: #{bottleneck_forward.4} parent=5 // pred_check
      _
    $region26: #{bottleneck_forward.4} parent=5 // pred_check_branch
      %116 = sbr.rel (%p113) target = $region28
    $region27: #{bottleneck_forward.4} parent=5 // pred_region
      %s117 = ssub.s32 %s8, 1
      %p118 = scmp.lt.s32.totalorder %s13, 1
      %s119 = scalar_select %p118, %s13, 1
      %s120 = smul.addr %s119, 8
      %s121 = smul.addr %s120, 8
      %s122 = scalar_lea.vmem %s0, %s121
      %p123 = pneg %p34
      %p124 = pneg %p31
      %p125 = pneg %p55
      %p126 = pneg %p52
      %p127 = pneg %p81
      %p128 = pneg %p78
      %p129 = scmp.lt.s32.totalorder %s13, 1
      %s130 = scalar_select %p129, %s13, 1
      %s131 = smul.addr %s130, 8
      %s132 = smul.addr %s131, 8
      %s133 = scalar_lea.vmem %s2, %s132
      %p134 = scmp.lt.s32.totalorder %s13, 1
      %s135 = scalar_select %p134, %s13, 1
      %s136 = smul.addr %s135, 8
      %s137 = smul.addr %s136, 8
      %s138 = scalar_lea.vmem %s0, %s137
      %p139 = scmp.lt.s32.totalorder %s13, 1
      %s140 = scalar_select %p139, %s13, 1
      %s141 = smul.addr %s140, 8
      %s142 = smul.addr %s141, 8
      %s143 = scalar_lea.vmem %s2, %s142
      %vm144 = vcmask 31744
      %145 = vst.msk [vmem:[#allocation2] sm:$0xff] %vm144, 0.0
      %vm146 = vcmask 25600
      %147 = vst.msk [vmem:[#allocation2 + $0x8] sm:$0x3] %vm146, 0.0
      %148 = vst.msk [vmem:[#allocation2 + $0x10] sm:$0xff] %vm144, 0.0
      %149 = vst.msk [vmem:[#allocation2 + $0x18] sm:$0x3] %vm146, 0.0
      %150 = vst.msk [vmem:[#allocation2 + $0x20] sm:$0xff] %vm144, 0.0
      %151 = vst.msk [vmem:[#allocation2 + $0x28] sm:$0x3] %vm146, 0.0
      %152 = vst.msk [vmem:[#allocation2 + $0x30] sm:$0xff] %vm144, 0.0
      %153 = vst.msk [vmem:[#allocation2 + $0x38] sm:$0x3] %vm146, 0.0
      %154 = vst.msk [vmem:[#allocation2 + $0x40] sm:$0xff] %vm144, 0.0
      %155 = vst.msk [vmem:[#allocation2 + $0x48] sm:$0x3] %vm146, 0.0
      %156 = vst.msk [vmem:[#allocation2 + $0x50] sm:$0xff] %vm144, 0.0
      %157 = vst.msk [vmem:[#allocation2 + $0x58] sm:$0x3] %vm146, 0.0
      %158 = vst.msk [vmem:[#allocation2 + $0x60] sm:$0xff] %vm144, 0.0
      %159 = vst.msk [vmem:[#allocation2 + $0x68] sm:$0x3] %vm146, 0.0
      %160 = vst.msk [vmem:[#allocation2 + $0x70] sm:$0xff] %vm144, 0.0
      %161 = vst.msk [vmem:[#allocation2 + $0x78] sm:$0x3] %vm146, 0.0
      %162 = vst.msk [vmem:[#allocation2 + $0x80] sm:$0xff] %vm144, 0.0
      %163 = vst.msk [vmem:[#allocation2 + $0x88] sm:$0x3] %vm146, 0.0
      %164 = vst.msk [vmem:[#allocation2 + $0x90] sm:$0xff] %vm144, 0.0
      %165 = vst.msk [vmem:[#allocation2 + $0x98] sm:$0x3] %vm146, 0.0
      %v166 = vld [vmem:[%s138] sm:$0xff]
      %v167 = vld [vmem:[%s138 + $0x8] sm:$0xff]
      %v168 = vld [vmem:[%s138 + $0x10] sm:$0xff]
      %v169 = vld [vmem:[%s138 + $0x18] sm:$0xff]
      %v170 = vld [vmem:[%s138 + $0x20] sm:$0xff]
      %v171 = vld [vmem:[%s138 + $0x28] sm:$0xff]
      %v172 = vld [vmem:[%s138 + $0x30] sm:$0xff]
      %v173 = vld [vmem:[%s138 + $0x38] sm:$0xff]
      %s174 = scalar_lea.vmem [#allocation2], 16
      %175 = vst.msk [vmem:[%s174 + $0x1] sm:$0xff] %vm144, %v166
      %176 = vst.msk [vmem:[%s174 + $0x11] sm:$0xff] %vm144, %v167
      %177 = vst.msk [vmem:[%s174 + $0x21] sm:$0xff] %vm144, %v168
      %178 = vst.msk [vmem:[%s174 + $0x31] sm:$0xff] %vm144, %v169
      %179 = vst.msk [vmem:[%s174 + $0x41] sm:$0xff] %vm144, %v170
      %180 = vst.msk [vmem:[%s174 + $0x51] sm:$0xff] %vm144, %v171
      %181 = vst.msk [vmem:[%s174 + $0x61] sm:$0xff] %vm144, %v172
      %182 = vst.msk [vmem:[%s174 + $0x71] sm:$0xff] %vm144, %v173
      %v183 = vld [vmem:[%s1] sm:$0xff]
      %v184 = vld [vmem:[%s1 + $0x8] sm:$0x1]
      %v185 = vld [vmem:[#allocation2] sm:$0xff]
      %v186 = vld [vmem:[#allocation2 + $0x10] sm:$0xff]
      %v187 = vld [vmem:[#allocation2 + $0x20] sm:$0xff]
      %v188 = vld [vmem:[#allocation2 + $0x30] sm:$0xff]
      %v189 = vld [vmem:[#allocation2 + $0x40] sm:$0xff]
      %v190 = vld [vmem:[#allocation2 + $0x50] sm:$0xff]
      %v191 = vld [vmem:[#allocation2 + $0x60] sm:$0xff]
      %v192 = vld [vmem:[#allocation2 + $0x70] sm:$0xff]
      %v193 = vperm.slane %v183, 0
      %v194 = vmul.f32 %v185, %v193
      %v195 = vmul.f32 %v186, %v193
      %v196 = vmul.f32 %v187, %v193
      %v197 = vmul.f32 %v188, %v193
      %v198 = vmul.f32 %v189, %v193
      %v199 = vmul.f32 %v190, %v193
      %v200 = vmul.f32 %v191, %v193
      %v201 = vmul.f32 %v192, %v193
      %v202 = vadd.f32 %v194, 0.0
      %v203 = vadd.f32 %v195, 0.0
      %v204 = vadd.f32 %v196, 0.0
      %v205 = vadd.f32 %v197, 0.0
      %v206 = vadd.f32 %v198, 0.0
      %v207 = vadd.f32 %v199, 0.0
      %v208 = vadd.f32 %v200, 0.0
      %v209 = vadd.f32 %v201, 0.0
      %v210 = vld [vmem:[#allocation2 + $0x1] sm:$0xff]
      %v211 = vld [vmem:[#allocation2 + $0x11] sm:$0xff]
      %v212 = vld [vmem:[#allocation2 + $0x21] sm:$0xff]
      %v213 = vld [vmem:[#allocation2 + $0x31] sm:$0xff]
      %v214 = vld [vmem:[#allocation2 + $0x41] sm:$0xff]
      %v215 = vld [vmem:[#allocation2 + $0x51] sm:$0xff]
      %v216 = vld [vmem:[#allocation2 + $0x61] sm:$0xff]
      %v217 = vld [vmem:[#allocation2 + $0x71] sm:$0xff]
      %v218 = vperm.slane %v183, 1
      %v219 = vmul.f32 %v210, %v218
      %v220 = vmul.f32 %v211, %v218
      %v221 = vmul.f32 %v212, %v218
      %v222 = vmul.f32 %v213, %v218
      %v223 = vmul.f32 %v214, %v218
      %v224 = vmul.f32 %v215, %v218
      %v225 = vmul.f32 %v216, %v218
      %v226 = vmul.f32 %v217, %v218
      %v227 = vadd.f32 %v202, %v219
      %v228 = vadd.f32 %v203, %v220
      %v229 = vadd.f32 %v204, %v221
      %v230 = vadd.f32 %v205, %v222
      %v231 = vadd.f32 %v206, %v223
      %v232 = vadd.f32 %v207, %v224
      %v233 = vadd.f32 %v208, %v225
      %v234 = vadd.f32 %v209, %v226
      %v235 = vld [vmem:[#allocation2 + $0x2] sm:$0xff]
      %v236 = vld [vmem:[#allocation2 + $0x12] sm:$0xff]
      %v237 = vld [vmem:[#allocation2 + $0x22] sm:$0xff]
      %v238 = vld [vmem:[#allocation2 + $0x32] sm:$0xff]
      %v239 = vld [vmem:[#allocation2 + $0x42] sm:$0xff]
      %v240 = vld [vmem:[#allocation2 + $0x52] sm:$0xff]
      %v241 = vld [vmem:[#allocation2 + $0x62] sm:$0xff]
      %v242 = vld [vmem:[#allocation2 + $0x72] sm:$0xff]
      %v243 = vperm.slane %v183, 2
      %v244 = vmul.f32 %v235, %v243
      %v245 = vmul.f32 %v236, %v243
      %v246 = vmul.f32 %v237, %v243
      %v247 = vmul.f32 %v238, %v243
      %v248 = vmul.f32 %v239, %v243
      %v249 = vmul.f32 %v240, %v243
      %v250 = vmul.f32 %v241, %v243
      %v251 = vmul.f32 %v242, %v243
      %v252 = vadd.f32 %v227, %v244
      %v253 = vadd.f32 %v228, %v245
      %v254 = vadd.f32 %v229, %v246
      %v255 = vadd.f32 %v230, %v247
      %v256 = vadd.f32 %v231, %v248
      %v257 = vadd.f32 %v232, %v249
      %v258 = vadd.f32 %v233, %v250
      %v259 = vadd.f32 %v234, %v251
      %v260 = vld [vmem:[%s174] sm:$0xff]
      %v261 = vld [vmem:[%s174 + $0x10] sm:$0xff]
      %v262 = vld [vmem:[%s174 + $0x20] sm:$0xff]
      %v263 = vld [vmem:[%s174 + $0x30] sm:$0xff]
      %v264 = vld [vmem:[%s174 + $0x40] sm:$0xff]
      %v265 = vld [vmem:[%s174 + $0x50] sm:$0xff]
      %v266 = vld [vmem:[%s174 + $0x60] sm:$0xff]
      %v267 = vld [vmem:[%s174 + $0x70] sm:$0xff]
      %v268 = vperm.slane %v183, 3
      %v269 = vmul.f32 %v260, %v268
      %v270 = vmul.f32 %v261, %v268
      %v271 = vmul.f32 %v262, %v268
      %v272 = vmul.f32 %v263, %v268
      %v273 = vmul.f32 %v264, %v268
      %v274 = vmul.f32 %v265, %v268
      %v275 = vmul.f32 %v266, %v268
      %v276 = vmul.f32 %v267, %v268
      %v277 = vadd.f32 %v252, %v269
      %v278 = vadd.f32 %v253, %v270
      %v279 = vadd.f32 %v254, %v271
      %v280 = vadd.f32 %v255, %v272
      %v281 = vadd.f32 %v256, %v273
      %v282 = vadd.f32 %v257, %v274
      %v283 = vadd.f32 %v258, %v275
      %v284 = vadd.f32 %v259, %v276
      %v285 = vld [vmem:[%s174 + $0x1] sm:$0xff]
      %v286 = vld [vmem:[%s174 + $0x11] sm:$0xff]
      %v287 = vld [vmem:[%s174 + $0x21] sm:$0xff]
      %v288 = vld [vmem:[%s174 + $0x31] sm:$0xff]
      %v289 = vld [vmem:[%s174 + $0x41] sm:$0xff]
      %v290 = vld [vmem:[%s174 + $0x51] sm:$0xff]
      %v291 = vld [vmem:[%s174 + $0x61] sm:$0xff]
      %v292 = vld [vmem:[%s174 + $0x71] sm:$0xff]
      %v293 = vperm.slane %v183, 4
      %v294 = vmul.f32 %v285, %v293
      %v295 = vmul.f32 %v286, %v293
      %v296 = vmul.f32 %v287, %v293
      %v297 = vmul.f32 %v288, %v293
      %v298 = vmul.f32 %v289, %v293
      %v299 = vmul.f32 %v290, %v293
      %v300 = vmul.f32 %v291, %v293
      %v301 = vmul.f32 %v292, %v293
      %v302 = vadd.f32 %v277, %v294
      %v303 = vadd.f32 %v278, %v295
      %v304 = vadd.f32 %v279, %v296
      %v305 = vadd.f32 %v280, %v297
      %v306 = vadd.f32 %v281, %v298
      %v307 = vadd.f32 %v282, %v299
      %v308 = vadd.f32 %v283, %v300
      %v309 = vadd.f32 %v284, %v301
      %v310 = vld [vmem:[%s174 + $0x2] sm:$0xff]
      %v311 = vld [vmem:[%s174 + $0x12] sm:$0xff]
      %v312 = vld [vmem:[%s174 + $0x22] sm:$0xff]
      %v313 = vld [vmem:[%s174 + $0x32] sm:$0xff]
      %v314 = vld [vmem:[%s174 + $0x42] sm:$0xff]
      %v315 = vld [vmem:[%s174 + $0x52] sm:$0xff]
      %v316 = vld [vmem:[%s174 + $0x62] sm:$0xff]
      %v317 = vld [vmem:[%s174 + $0x72] sm:$0xff]
      %v318 = vperm.slane %v183, 5
      %v319 = vmul.f32 %v310, %v318
      %v320 = vmul.f32 %v311, %v318
      %v321 = vmul.f32 %v312, %v318
      %v322 = vmul.f32 %v313, %v318
      %v323 = vmul.f32 %v314, %v318
      %v324 = vmul.f32 %v315, %v318
      %v325 = vmul.f32 %v316, %v318
      %v326 = vmul.f32 %v317, %v318
      %v327 = vadd.f32 %v302, %v319
      %v328 = vadd.f32 %v303, %v320
      %v329 = vadd.f32 %v304, %v321
      %v330 = vadd.f32 %v305, %v322
      %v331 = vadd.f32 %v306, %v323
      %v332 = vadd.f32 %v307, %v324
      %v333 = vadd.f32 %v308, %v325
      %v334 = vadd.f32 %v309, %v326
      %s335 = scalar_lea.vmem [#allocation2], 32
      %v336 = vld [vmem:[%s335] sm:$0xff]
      %v337 = vld [vmem:[%s335 + $0x10] sm:$0xff]
      %v338 = vld [vmem:[%s335 + $0x20] sm:$0xff]
      %v339 = vld [vmem:[%s335 + $0x30] sm:$0xff]
      %v340 = vld [vmem:[%s335 + $0x40] sm:$0xff]
      %v341 = vld [vmem:[%s335 + $0x50] sm:$0xff]
      %v342 = vld [vmem:[%s335 + $0x60] sm:$0xff]
      %v343 = vld [vmem:[%s335 + $0x70] sm:$0xff]
      %v344 = vperm.slane %v183, 6
      %v345 = vmul.f32 %v336, %v344
      %v346 = vmul.f32 %v337, %v344
      %v347 = vmul.f32 %v338, %v344
      %v348 = vmul.f32 %v339, %v344
      %v349 = vmul.f32 %v340, %v344
      %v350 = vmul.f32 %v341, %v344
      %v351 = vmul.f32 %v342, %v344
      %v352 = vmul.f32 %v343, %v344
      %v353 = vadd.f32 %v327, %v345
      %v354 = vadd.f32 %v328, %v346
      %v355 = vadd.f32 %v329, %v347
      %v356 = vadd.f32 %v330, %v348
      %v357 = vadd.f32 %v331, %v349
      %v358 = vadd.f32 %v332, %v350
      %v359 = vadd.f32 %v333, %v351
      %v360 = vadd.f32 %v334, %v352
      %v361 = vld [vmem:[%s335 + $0x1] sm:$0xff]
      %v362 = vld [vmem:[%s335 + $0x11] sm:$0xff]
      %v363 = vld [vmem:[%s335 + $0x21] sm:$0xff]
      %v364 = vld [vmem:[%s335 + $0x31] sm:$0xff]
      %v365 = vld [vmem:[%s335 + $0x41] sm:$0xff]
      %v366 = vld [vmem:[%s335 + $0x51] sm:$0xff]
      %v367 = vld [vmem:[%s335 + $0x61] sm:$0xff]
      %v368 = vld [vmem:[%s335 + $0x71] sm:$0xff]
      %v369 = vperm.slane %v183, 7
      %v370 = vmul.f32 %v361, %v369
      %v371 = vmul.f32 %v362, %v369
      %v372 = vmul.f32 %v363, %v369
      %v373 = vmul.f32 %v364, %v369
      %v374 = vmul.f32 %v365, %v369
      %v375 = vmul.f32 %v366, %v369
      %v376 = vmul.f32 %v367, %v369
      %v377 = vmul.f32 %v368, %v369
      %v378 = vadd.f32 %v353, %v370
      %v379 = vadd.f32 %v354, %v371
      %v380 = vadd.f32 %v355, %v372
      %v381 = vadd.f32 %v356, %v373
      %v382 = vadd.f32 %v357, %v374
      %v383 = vadd.f32 %v358, %v375
      %v384 = vadd.f32 %v359, %v376
      %v385 = vadd.f32 %v360, %v377
      %v386 = vld [vmem:[%s335 + $0x2] sm:$0xff]
      %v387 = vld [vmem:[%s335 + $0x12] sm:$0xff]
      %v388 = vld [vmem:[%s335 + $0x22] sm:$0xff]
      %v389 = vld [vmem:[%s335 + $0x32] sm:$0xff]
      %v390 = vld [vmem:[%s335 + $0x42] sm:$0xff]
      %v391 = vld [vmem:[%s335 + $0x52] sm:$0xff]
      %v392 = vld [vmem:[%s335 + $0x62] sm:$0xff]
      %v393 = vld [vmem:[%s335 + $0x72] sm:$0xff]
      %v394 = vperm.slane %v184, 0
      %v395 = vmul.f32 %v386, %v394
      %v396 = vmul.f32 %v387, %v394
      %v397 = vmul.f32 %v388, %v394
      %v398 = vmul.f32 %v389, %v394
      %v399 = vmul.f32 %v390, %v394
      %v400 = vmul.f32 %v391, %v394
      %v401 = vmul.f32 %v392, %v394
      %v402 = vmul.f32 %v393, %v394
      %v403 = vadd.f32 %v378, %v395
      %v404 = vadd.f32 %v379, %v396
      %v405 = vadd.f32 %v380, %v397
      %v406 = vadd.f32 %v381, %v398
      %v407 = vadd.f32 %v382, %v399
      %v408 = vadd.f32 %v383, %v400
      %v409 = vadd.f32 %v384, %v401
      %v410 = vadd.f32 %v385, %v402
      %411 = vst.msk [vmem:[%s143] sm:$0xff] %vm144, %v403
      %412 = vst.msk [vmem:[%s143 + $0x8] sm:$0xff] %vm144, %v404
      %413 = vst.msk [vmem:[%s143 + $0x10] sm:$0xff] %vm144, %v405
      %414 = vst.msk [vmem:[%s143 + $0x18] sm:$0xff] %vm144, %v406
      %415 = vst.msk [vmem:[%s143 + $0x20] sm:$0xff] %vm144, %v407
      %416 = vst.msk [vmem:[%s143 + $0x28] sm:$0xff] %vm144, %v408
      %417 = vst.msk [vmem:[%s143 + $0x30] sm:$0xff] %vm144, %v409
      %418 = vst.msk [vmem:[%s143 + $0x38] sm:$0xff] %vm144, %v410
      %p419 = scmp.lt.s32.totalorder %s13, 1
      %s420 = scalar_select %p419, %s13, 1
      %s421 = smul.addr %s420, 8
      %s422 = smul.addr %s421, 8
      %s423 = scalar_lea.vmem %s2, %s422
      // Predicated region
      $region29: #{bottleneck_forward.4} parent=27 // pred_check
        %p424 = pneg %p78
      $region30: #{bottleneck_forward.4} parent=27 // pred_check_branch
        %426 = sbr.rel (%p424) target = $region32
      $region31: #{bottleneck_forward.4} parent=27 // pred_region
        _
      $region32: #{bottleneck_forward.4} parent=27 // pred_fallthru
        _
    $region28: #{bottleneck_forward.4} parent=5 // pred_fallthru
      _
    %p427 = scmp.le.s32.totalorder 2, %s8
    // Predicated region
    $region33: #{bottleneck_forward.4} parent=5 // pred_check
      %p428 = pneg %p427
    $region34: #{bottleneck_forward.4} parent=5 // pred_check_branch
      %430 = sbr.rel (%p428) target = $region36
    $region35: #{bottleneck_forward.4} parent=5 // pred_region
      %s431 = ssub.s32 %s8, 2
      // Predicated region
      $region37: #{bottleneck_forward.4} parent=35 // pred_check
        %p432 = pneg %p84
      $region38: #{bottleneck_forward.4} parent=35 // pred_check_branch
        %434 = sbr.rel (%p432) target = $region40
      $region39: #{bottleneck_forward.4} parent=35 // pred_region
        %p435 = scmp.lt.s32.totalorder %s14, 1
        %s436 = scalar_select %p435, %s14, 1
        %s437 = smul.addr %s436, 8
        %s438 = smul.addr %s437, 8
        %s439 = scalar_lea.vmem %s2, %s438
      $region40: #{bottleneck_forward.4} parent=35 // pred_fallthru
        _
    $region36: #{bottleneck_forward.4} parent=5 // pred_fallthru
      _
  $region6: #{bottleneck_forward.4} parent=0 // loop_footer
    %s12 = sadd.s32 1, %s8
  $region7: #{bottleneck_forward.4} parent=0 // loop_footer_branch
    %7 = sbr.rel target = $region3
  $region8: #{bottleneck_forward.4} parent=0 // loop_exit
    _

// kernel: bottleneck_forward.3
$region0: #{bottleneck_forward.3}
  #allocation0 [shape = 'u32[]', space=smem, size = 0x4, offset = 0x4, fixed_abs, tag = 'smem constant byte address 0x4 - core index']
  #allocation1 [shape = 'u32[72,128]{1,0:T(1,128)}', space=vmem, size = 0x9000, scoped, tag = 'internal scratch']
  %s0 = inlined_call_operand.vmem [shape: f32[128,16], index: 0, kind: input, shape index: {}]
  %s1 = inlined_call_operand.vmem [shape: bf16[2,8,2], index: 1, kind: input, shape index: {}]
  %s2 = inlined_call_operand.vmem [shape: f32[1,4], index: 2, kind: input, shape index: {}]
  %s3 = inlined_call_operand.vmem [shape: f32[1,4], index: 3, kind: input, shape index: {}]
  %s4 = inlined_call_operand.vmem [shape: f32[128,4], index: 4, kind: output, shape index: {}]
  %s5 = sld [smem:[#allocation0]]
  $region26: #{bottleneck_forward.3} parent=0
    _
  %s7 = ssub.s32 1, %s5
  %s8 = scalar_select 0, %s7, %s5
  // Predicated region
  $region2: #{bottleneck_forward.3} parent=0 // pred_check
    _
  $region3: #{bottleneck_forward.3} parent=0 // pred_check_branch
    %10 = sbr.rel (0) target = $region5
  $region4: #{bottleneck_forward.3} parent=0 // pred_region
    _
  $region5: #{bottleneck_forward.3} parent=0 // pred_fallthru
    _
  // Predicated region
  $region6: #{bottleneck_forward.3} parent=0 // pred_check
    _
  $region7: #{bottleneck_forward.3} parent=0 // pred_check_branch
    %12 = sbr.rel (0) target = $region9
  $region8: #{bottleneck_forward.3} parent=0 // pred_region
    _
  $region9: #{bottleneck_forward.3} parent=0 // pred_fallthru
    _
  // Predicated region
  $region10: #{bottleneck_forward.3} parent=0 // pred_check
    _
  $region11: #{bottleneck_forward.3} parent=0 // pred_check_branch
    %14 = sbr.rel (0) target = $region13
  $region12: #{bottleneck_forward.3} parent=0 // pred_region
    _
  $region13: #{bottleneck_forward.3} parent=0 // pred_fallthru
    _
  // Predicated region
  $region14: #{bottleneck_forward.3} parent=0 // pred_check
    _
  $region15: #{bottleneck_forward.3} parent=0 // pred_check_branch
    %16 = sbr.rel (0) target = $region17
  $region16: #{bottleneck_forward.3} parent=0 // pred_region
    _
  $region17: #{bottleneck_forward.3} parent=0 // pred_fallthru
    _
  %v18 = vld [vmem:[%s0] sm:$0xff]
  %v19 = vld [vmem:[%s0 + $0x8] sm:$0xff]
  %v20 = vld [vmem:[%s0 + $0x10] sm:$0xff]
  %v21 = vld [vmem:[%s0 + $0x18] sm:$0xff]
  %v22 = vld [vmem:[%s0 + $0x20] sm:$0xff]
  %v23 = vld [vmem:[%s0 + $0x28] sm:$0xff]
  %v24 = vld [vmem:[%s0 + $0x30] sm:$0xff]
  %v25 = vld [vmem:[%s0 + $0x38] sm:$0xff]
  %v26 = vld [vmem:[%s0 + $0x40] sm:$0xff]
  %v27 = vld [vmem:[%s0 + $0x48] sm:$0xff]
  %v28 = vld [vmem:[%s0 + $0x50] sm:$0xff]
  %v29 = vld [vmem:[%s0 + $0x58] sm:$0xff]
  %v30 = vld [vmem:[%s0 + $0x60] sm:$0xff]
  %v31 = vld [vmem:[%s0 + $0x68] sm:$0xff]
  %v32 = vld [vmem:[%s0 + $0x70] sm:$0xff]
  %v33 = vld [vmem:[%s0 + $0x78] sm:$0xff]
  %v34 = vld [vmem:[%s2] sm:$0x1]
  %v35 = vld [vmem:[%s3] sm:$0x1]
  %v36 = vpack.c.bf16 %v19, %v18
  %v37 = vpack.c.bf16 %v21, %v20
  %v38 = vpack.c.bf16 %v23, %v22
  %v39 = vpack.c.bf16 %v25, %v24
  %v40 = vpack.c.bf16 %v27, %v26
  %v41 = vpack.c.bf16 %v29, %v28
  %v42 = vpack.c.bf16 %v31, %v30
  %v43 = vpack.c.bf16 %v33, %v32
  %v44 = vld [vmem:[%s1] sm:$0xf]
  %vm45 = vcmask 64512
  %v47 = vsel %vm45, %v36, 0
  %v50 = vsel %vm45, %v37, 0
  %v53 = vsel %vm45, %v38, 0
  %v56 = vsel %vm45, %v39, 0
  %v59 = vsel %vm45, %v40, 0
  %v62 = vsel %vm45, %v41, 0
  %v65 = vsel %vm45, %v42, 0
  %v68 = vsel %vm45, %v43, 0
  %vm70 = vcmask 1043456
  %v72 = vsel %vm70, %v44, 0
  %74 = vmatpush.bf16.msra.mxu0 0
  %75 = vmatpush.bf16.msra.mxu0 0
  %76 = vmatpush.bf16.msra.mxu0 0
  %77 = vmatpush.bf16.msra.mxu0 0
  %78 = vmatpush.bf16.msra.mxu0 0
  %79 = vmatpush.bf16.msra.mxu0 0
  %80 = vmatpush.bf16.msra.mxu0 0
  %81 = vmatpush.bf16.msra.mxu0 %v72
  %82 = vmatmul.bf16.gmra.mxu0 %v47
  %v83 = vpop.f32.mrf.mxu0
  %v84 = vadd.f32 0.0, %v83
  %v85 = vpop.f32.mrf.mxu0
  %v86 = vadd.f32 0.0, %v85
  %87 = vmatmul.bf16.gmra.mxu0 %v50
  %v88 = vpop.f32.mrf.mxu0
  %v89 = vadd.f32 0.0, %v88
  %v90 = vpop.f32.mrf.mxu0
  %v91 = vadd.f32 0.0, %v90
  %92 = vmatmul.bf16.gmra.mxu0 %v53
  %v93 = vpop.f32.mrf.mxu0
  %v94 = vadd.f32 0.0, %v93
  %v95 = vpop.f32.mrf.mxu0
  %v96 = vadd.f32 0.0, %v95
  %97 = vmatmul.bf16.gmra.mxu0 %v56
  %v98 = vpop.f32.mrf.mxu0
  %v99 = vadd.f32 0.0, %v98
  %v100 = vpop.f32.mrf.mxu0
  %v101 = vadd.f32 0.0, %v100
  %102 = vmatmul.bf16.gmra.mxu0 %v59
  %v103 = vpop.f32.mrf.mxu0
  %v104 = vadd.f32 0.0, %v103
  %v105 = vpop.f32.mrf.mxu0
  %v106 = vadd.f32 0.0, %v105
  %107 = vmatmul.bf16.gmra.mxu0 %v62
  %v108 = vpop.f32.mrf.mxu0
  %v109 = vadd.f32 0.0, %v108
  %v110 = vpop.f32.mrf.mxu0
  %v111 = vadd.f32 0.0, %v110
  %112 = vmatmul.bf16.gmra.mxu0 %v65
  %v113 = vpop.f32.mrf.mxu0
  %v114 = vadd.f32 0.0, %v113
  %v115 = vpop.f32.mrf.mxu0
  %v116 = vadd.f32 0.0, %v115
  %117 = vmatmul.bf16.gmra.mxu0 %v68
  %v118 = vpop.f32.mrf.mxu0
  %v119 = vadd.f32 0.0, %v118
  %v120 = vpop.f32.mrf.mxu0
  %v121 = vadd.f32 0.0, %v120
  %122 = vdwg.mxu0
  %vm123 = vcmask 15360
  %v124 = vsel %vm123, %v84, 0.0
  %v125 = vsel %vm123, %v86, 0.0
  %v126 = vadd.f32 %v124, %v125
  %v127 = vsel %vm123, %v89, 0.0
  %v128 = vadd.f32 %v126, %v127
  %v129 = vsel %vm123, %v91, 0.0
  %v130 = vadd.f32 %v128, %v129
  %v131 = vsel %vm123, %v94, 0.0
  %v132 = vadd.f32 %v130, %v131
  %v133 = vsel %vm123, %v96, 0.0
  %v134 = vadd.f32 %v132, %v133
  %v135 = vsel %vm123, %v99, 0.0
  %v136 = vadd.f32 %v134, %v135
  %v137 = vsel %vm123, %v101, 0.0
  %v138 = vadd.f32 %v136, %v137
  %v139 = vsel %vm123, %v104, 0.0
  %v140 = vadd.f32 %v138, %v139
  %v141 = vsel %vm123, %v106, 0.0
  %v142 = vadd.f32 %v140, %v141
  %v143 = vsel %vm123, %v109, 0.0
  %v144 = vadd.f32 %v142, %v143
  %v145 = vsel %vm123, %v111, 0.0
  %v146 = vadd.f32 %v144, %v145
  %v147 = vsel %vm123, %v114, 0.0
  %v148 = vadd.f32 %v146, %v147
  %v149 = vsel %vm123, %v116, 0.0
  %v150 = vadd.f32 %v148, %v149
  %v151 = vsel %vm123, %v119, 0.0
  %v152 = vadd.f32 %v150, %v151
  %v153 = vsel %vm123, %v121, 0.0
  %v154 = vadd.f32 %v152, %v153
  %v155 = vrot.slane %v154, 4
  %v156 = vadd.f32 %v154, %v155
  %v157 = vrot.slane %v156, 2
  %v158 = vadd.f32 %v156, %v157
  %v159 = vrot.slane %v158, 1
  %v160 = vadd.f32 %v158, %v159
  %v161 = vrcp.pop 128.0
  %v162 = vmul.f32 128.0, %v161
  %v163 = vsub.f32 1.0, %v162
  %v164 = vmul.f32 %v161, %v163
  %v165 = vadd.f32 %v161, %v164
  %vm166 = vweird.f32 %v161
  %v167 = vsel %vm166, %v161, %v165
  %v168 = vmul.f32 %v160, %v167
  %v169 = vsub.f32 %v84, %v168
  %v170 = vsub.f32 %v86, %v168
  %v171 = vsub.f32 %v89, %v168
  %v172 = vsub.f32 %v91, %v168
  %v173 = vsub.f32 %v94, %v168
  %v174 = vsub.f32 %v96, %v168
  %v175 = vsub.f32 %v99, %v168
  %v176 = vsub.f32 %v101, %v168
  %v177 = vsub.f32 %v104, %v168
  %v178 = vsub.f32 %v106, %v168
  %v179 = vsub.f32 %v109, %v168
  %v180 = vsub.f32 %v111, %v168
  %v181 = vsub.f32 %v114, %v168
  %v182 = vsub.f32 %v116, %v168
  %v183 = vsub.f32 %v119, %v168
  %v184 = vsub.f32 %v121, %v168
  %v185 = vmul.f32 %v169, %v169
  %v186 = vmul.f32 %v170, %v170
  %v187 = vmul.f32 %v171, %v171
  %v188 = vmul.f32 %v172, %v172
  %v189 = vmul.f32 %v173, %v173
  %v190 = vmul.f32 %v174, %v174
  %v191 = vmul.f32 %v175, %v175
  %v192 = vmul.f32 %v176, %v176
  %v193 = vmul.f32 %v177, %v177
  %v194 = vmul.f32 %v178, %v178
  %v195 = vmul.f32 %v179, %v179
  %v196 = vmul.f32 %v180, %v180
  %v197 = vmul.f32 %v181, %v181
  %v198 = vmul.f32 %v182, %v182
  %v199 = vmul.f32 %v183, %v183
  %v200 = vmul.f32 %v184, %v184
  %v201 = vsel %vm123, %v185, 0.0
  %v202 = vsel %vm123, %v186, 0.0
  %v203 = vadd.f32 %v201, %v202
  %v204 = vsel %vm123, %v187, 0.0
  %v205 = vadd.f32 %v203, %v204
  %v206 = vsel %vm123, %v188, 0.0
  %v207 = vadd.f32 %v205, %v206
  %v208 = vsel %vm123, %v189, 0.0
  %v209 = vadd.f32 %v207, %v208
  %v210 = vsel %vm123, %v190, 0.0
  %v211 = vadd.f32 %v209, %v210
  %v212 = vsel %vm123, %v191, 0.0
  %v213 = vadd.f32 %v211, %v212
  %v214 = vsel %vm123, %v192, 0.0
  %v215 = vadd.f32 %v213, %v214
  %v216 = vsel %vm123, %v193, 0.0
  %v217 = vadd.f32 %v215, %v216
  %v218 = vsel %vm123, %v194, 0.0
  %v219 = vadd.f32 %v217, %v218
  %v220 = vsel %vm123, %v195, 0.0
  %v221 = vadd.f32 %v219, %v220
  %v222 = vsel %vm123, %v196, 0.0
  %v223 = vadd.f32 %v221, %v222
  %v224 = vsel %vm123, %v197, 0.0
  %v225 = vadd.f32 %v223, %v224
  %v226 = vsel %vm123, %v198, 0.0
  %v227 = vadd.f32 %v225, %v226
  %v228 = vsel %vm123, %v199, 0.0
  %v229 = vadd.f32 %v227, %v228
  %v230 = vsel %vm123, %v200, 0.0
  %v231 = vadd.f32 %v229, %v230
  %v232 = vrot.slane %v231, 4
  %v233 = vadd.f32 %v231, %v232
  %v234 = vrot.slane %v233, 2
  %v235 = vadd.f32 %v233, %v234
  %v236 = vrot.slane %v235, 1
  %v237 = vadd.f32 %v235, %v236
  %v238 = vmul.f32 %v237, %v167
  %v239 = vadd.f32 %v238, 1e-05
  %v240 = vrsqrt.pop %v239
  %v241 = vmul.f32 %v240, %v239
  %v242 = vmul.f32 %v241, %v240
  %v243 = vmul.f32 0.5, %v242
  %v244 = vsub.f32 1.5, %v243
  %v245 = vmul.f32 %v240, %v244
  %vm246 = vweird.f32 %v239
  %vm247 = vweird.f32 %v240
  %vm248 = vmor %vm246, %vm247
  %v249 = vsel %vm248, %v240, %v245
  %v250 = vmul.f32 %v169, %v249
  %v251 = vmul.f32 %v170, %v249
  %v252 = vmul.f32 %v171, %v249
  %v253 = vmul.f32 %v172, %v249
  %v254 = vmul.f32 %v173, %v249
  %v255 = vmul.f32 %v174, %v249
  %v256 = vmul.f32 %v175, %v249
  %v257 = vmul.f32 %v176, %v249
  %v258 = vmul.f32 %v177, %v249
  %v259 = vmul.f32 %v178, %v249
  %v260 = vmul.f32 %v179, %v249
  %v261 = vmul.f32 %v180, %v249
  %v262 = vmul.f32 %v181, %v249
  %v263 = vmul.f32 %v182, %v249
  %v264 = vmul.f32 %v183, %v249
  %v265 = vmul.f32 %v184, %v249
  %v267 = vperm.slane %v34, 0
  %v269 = vmul.f32 %v250, %v267
  %v270 = vmul.f32 %v251, %v267
  %v271 = vmul.f32 %v252, %v267
  %v272 = vmul.f32 %v253, %v267
  %v273 = vmul.f32 %v254, %v267
  %v274 = vmul.f32 %v255, %v267
  %v275 = vmul.f32 %v256, %v267
  %v276 = vmul.f32 %v257, %v267
  %v277 = vmul.f32 %v258, %v267
  %v278 = vmul.f32 %v259, %v267
  %v279 = vmul.f32 %v260, %v267
  %v280 = vmul.f32 %v261, %v267
  %v281 = vmul.f32 %v262, %v267
  %v282 = vmul.f32 %v263, %v267
  %v283 = vmul.f32 %v264, %v267
  %v284 = vmul.f32 %v265, %v267
  %v286 = vperm.slane %v35, 0
  %v288 = vadd.f32 %v269, %v286
  %v289 = vadd.f32 %v270, %v286
  %v290 = vadd.f32 %v271, %v286
  %v291 = vadd.f32 %v272, %v286
  %v292 = vadd.f32 %v273, %v286
  %v293 = vadd.f32 %v274, %v286
  %v294 = vadd.f32 %v275, %v286
  %v295 = vadd.f32 %v276, %v286
  %v296 = vadd.f32 %v277, %v286
  %v297 = vadd.f32 %v278, %v286
  %v298 = vadd.f32 %v279, %v286
  %v299 = vadd.f32 %v280, %v286
  %v300 = vadd.f32 %v281, %v286
  %v301 = vadd.f32 %v282, %v286
  %v302 = vadd.f32 %v283, %v286
  %v303 = vadd.f32 %v284, %v286
  %v304 = vmax.f32 %v288, 0.0
  %v305 = vmax.f32 %v289, 0.0
  %v306 = vmax.f32 %v290, 0.0
  %v307 = vmax.f32 %v291, 0.0
  %v308 = vmax.f32 %v292, 0.0
  %v309 = vmax.f32 %v293, 0.0
  %v310 = vmax.f32 %v294, 0.0
  %v311 = vmax.f32 %v295, 0.0
  %v312 = vmax.f32 %v296, 0.0
  %v313 = vmax.f32 %v297, 0.0
  %v314 = vmax.f32 %v298, 0.0
  %v315 = vmax.f32 %v299, 0.0
  %v316 = vmax.f32 %v300, 0.0
  %v317 = vmax.f32 %v301, 0.0
  %v318 = vmax.f32 %v302, 0.0
  %v319 = vmax.f32 %v303, 0.0
  %320 = vst.msk [vmem:[%s4] sm:$0xff] %vm123, %v304
  %321 = vst.msk [vmem:[%s4 + $0x8] sm:$0xff] %vm123, %v305
  %322 = vst.msk [vmem:[%s4 + $0x10] sm:$0xff] %vm123, %v306
  %323 = vst.msk [vmem:[%s4 + $0x18] sm:$0xff] %vm123, %v307
  %324 = vst.msk [vmem:[%s4 + $0x20] sm:$0xff] %vm123, %v308
  %325 = vst.msk [vmem:[%s4 + $0x28] sm:$0xff] %vm123, %v309
  %326 = vst.msk [vmem:[%s4 + $0x30] sm:$0xff] %vm123, %v310
  %327 = vst.msk [vmem:[%s4 + $0x38] sm:$0xff] %vm123, %v311
  %328 = vst.msk [vmem:[%s4 + $0x40] sm:$0xff] %vm123, %v312
  %329 = vst.msk [vmem:[%s4 + $0x48] sm:$0xff] %vm123, %v313
  %330 = vst.msk [vmem:[%s4 + $0x50] sm:$0xff] %vm123, %v314
  %331 = vst.msk [vmem:[%s4 + $0x58] sm:$0xff] %vm123, %v315
  %332 = vst.msk [vmem:[%s4 + $0x60] sm:$0xff] %vm123, %v316
  %333 = vst.msk [vmem:[%s4 + $0x68] sm:$0xff] %vm123, %v317
  %334 = vst.msk [vmem:[%s4 + $0x70] sm:$0xff] %vm123, %v318
  %335 = vst.msk [vmem:[%s4 + $0x78] sm:$0xff] %vm123, %v319
  %s336 = scalar_lea.vmem %s1, 4
  %v337 = vld [vmem:[%s336] sm:$0xf]
  %346 = vrot.lane.b32.xlu0 %v36, 120
  %v347 = vpop.permute.xlu0 %346
  %348 = vrot.lane.b32.xlu0 %v37, 120
  %v349 = vpop.permute.xlu0 %348
  %350 = vrot.lane.b32.xlu0 %v38, 120
  %v351 = vpop.permute.xlu0 %350
  %352 = vrot.lane.b32.xlu0 %v39, 120
  %v353 = vpop.permute.xlu0 %352
  %354 = vrot.lane.b32.xlu0 %v40, 120
  %v355 = vpop.permute.xlu0 %354
  %356 = vrot.lane.b32.xlu0 %v41, 120
  %v357 = vpop.permute.xlu0 %356
  %358 = vrot.lane.b32.xlu0 %v42, 120
  %v359 = vpop.permute.xlu0 %358
  %360 = vrot.lane.b32.xlu0 %v43, 120
  %v361 = vpop.permute.xlu0 %360
  %v363 = vsel %vm45, %v347, 0
  %v366 = vsel %vm45, %v349, 0
  %v369 = vsel %vm45, %v351, 0
  %v372 = vsel %vm45, %v353, 0
  %v375 = vsel %vm45, %v355, 0
  %v378 = vsel %vm45, %v357, 0
  %v381 = vsel %vm45, %v359, 0
  %v384 = vsel %vm45, %v361, 0
  %v387 = vsel %vm70, %v337, 0
  %389 = vmatpush.bf16.msra.mxu0 0
  %390 = vmatpush.bf16.msra.mxu0 0
  %391 = vmatpush.bf16.msra.mxu0 0
  %392 = vmatpush.bf16.msra.mxu0 0
  %393 = vmatpush.bf16.msra.mxu0 0
  %394 = vmatpush.bf16.msra.mxu0 0
  %395 = vmatpush.bf16.msra.mxu0 0
  %396 = vmatpush.bf16.msra.mxu0 %v387
  %397 = vmatmul.bf16.gmra.mxu0 %v363
  %v398 = vpop.f32.mrf.mxu0
  %v399 = vadd.f32 0.0, %v398
  %v400 = vpop.f32.mrf.mxu0
  %v401 = vadd.f32 0.0, %v400
  %402 = vmatmul.bf16.gmra.mxu0 %v366
  %v403 = vpop.f32.mrf.mxu0
  %v404 = vadd.f32 0.0, %v403
  %v405 = vpop.f32.mrf.mxu0
  %v406 = vadd.f32 0.0, %v405
  %407 = vmatmul.bf16.gmra.mxu0 %v369
  %v408 = vpop.f32.mrf.mxu0
  %v409 = vadd.f32 0.0, %v408
  %v410 = vpop.f32.mrf.mxu0
  %v411 = vadd.f32 0.0, %v410
  %412 = vmatmul.bf16.gmra.mxu0 %v372
  %v413 = vpop.f32.mrf.mxu0
  %v414 = vadd.f32 0.0, %v413
  %v415 = vpop.f32.mrf.mxu0
  %v416 = vadd.f32 0.0, %v415
  %417 = vmatmul.bf16.gmra.mxu0 %v375
  %v418 = vpop.f32.mrf.mxu0
  %v419 = vadd.f32 0.0, %v418
  %v420 = vpop.f32.mrf.mxu0
  %v421 = vadd.f32 0.0, %v420
  %422 = vmatmul.bf16.gmra.mxu0 %v378
  %v423 = vpop.f32.mrf.mxu0
  %v424 = vadd.f32 0.0, %v423
  %v425 = vpop.f32.mrf.mxu0
  %v426 = vadd.f32 0.0, %v425
  %427 = vmatmul.bf16.gmra.mxu0 %v381
  %v428 = vpop.f32.mrf.mxu0
  %v429 = vadd.f32 0.0, %v428
  %v430 = vpop.f32.mrf.mxu0
  %v431 = vadd.f32 0.0, %v430
  %432 = vmatmul.bf16.gmra.mxu0 %v384
  %v433 = vpop.f32.mrf.mxu0
  %v434 = vadd.f32 0.0, %v433
  %v435 = vpop.f32.mrf.mxu0
  %v436 = vadd.f32 0.0, %v435
  %437 = vdwg.mxu0
  %v438 = vsel %vm123, %v399, 0.0
  %v439 = vsel %vm123, %v401, 0.0
  %v440 = vadd.f32 %v438, %v439
  %v441 = vsel %vm123, %v404, 0.0
  %v442 = vadd.f32 %v440, %v441
  %v443 = vsel %vm123, %v406, 0.0
  %v444 = vadd.f32 %v442, %v443
  %v445 = vsel %vm123, %v409, 0.0
  %v446 = vadd.f32 %v444, %v445
  %v447 = vsel %vm123, %v411, 0.0
  %v448 = vadd.f32 %v446, %v447
  %v449 = vsel %vm123, %v414, 0.0
  %v450 = vadd.f32 %v448, %v449
  %v451 = vsel %vm123, %v416, 0.0
  %v452 = vadd.f32 %v450, %v451
  %v453 = vsel %vm123, %v419, 0.0
  %v454 = vadd.f32 %v452, %v453
  %v455 = vsel %vm123, %v421, 0.0
  %v456 = vadd.f32 %v454, %v455
  %v457 = vsel %vm123, %v424, 0.0
  %v458 = vadd.f32 %v456, %v457
  %v459 = vsel %vm123, %v426, 0.0
  %v460 = vadd.f32 %v458, %v459
  %v461 = vsel %vm123, %v429, 0.0
  %v462 = vadd.f32 %v460, %v461
  %v463 = vsel %vm123, %v431, 0.0
  %v464 = vadd.f32 %v462, %v463
  %v465 = vsel %vm123, %v434, 0.0
  %v466 = vadd.f32 %v464, %v465
  %v467 = vsel %vm123, %v436, 0.0
  %v468 = vadd.f32 %v466, %v467
  %v469 = vrot.slane %v468, 4
  %v470 = vadd.f32 %v468, %v469
  %v471 = vrot.slane %v470, 2
  %v472 = vadd.f32 %v470, %v471
  %v473 = vrot.slane %v472, 1
  %v474 = vadd.f32 %v472, %v473
  %v475 = vmul.f32 %v474, %v167
  %v476 = vsub.f32 %v399, %v475
  %v477 = vsub.f32 %v401, %v475
  %v478 = vsub.f32 %v404, %v475
  %v479 = vsub.f32 %v406, %v475
  %v480 = vsub.f32 %v409, %v475
  %v481 = vsub.f32 %v411, %v475
  %v482 = vsub.f32 %v414, %v475
  %v483 = vsub.f32 %v416, %v475
  %v484 = vsub.f32 %v419, %v475
  %v485 = vsub.f32 %v421, %v475
  %v486 = vsub.f32 %v424, %v475
  %v487 = vsub.f32 %v426, %v475
  %v488 = vsub.f32 %v429, %v475
  %v489 = vsub.f32 %v431, %v475
  %v490 = vsub.f32 %v434, %v475
  %v491 = vsub.f32 %v436, %v475
  %v492 = vmul.f32 %v476, %v476
  %v493 = vmul.f32 %v477, %v477
  %v494 = vmul.f32 %v478, %v478
  %v495 = vmul.f32 %v479, %v479
  %v496 = vmul.f32 %v480, %v480
  %v497 = vmul.f32 %v481, %v481
  %v498 = vmul.f32 %v482, %v482
  %v499 = vmul.f32 %v483, %v483
  %v500 = vmul.f32 %v484, %v484
  %v501 = vmul.f32 %v485, %v485
  %v502 = vmul.f32 %v486, %v486
  %v503 = vmul.f32 %v487, %v487
  %v504 = vmul.f32 %v488, %v488
  %v505 = vmul.f32 %v489, %v489
  %v506 = vmul.f32 %v490, %v490
  %v507 = vmul.f32 %v491, %v491
  %v508 = vsel %vm123, %v492, 0.0
  %v509 = vsel %vm123, %v493, 0.0
  %v510 = vadd.f32 %v508, %v509
  %v511 = vsel %vm123, %v494, 0.0
  %v512 = vadd.f32 %v510, %v511
  %v513 = vsel %vm123, %v495, 0.0
  %v514 = vadd.f32 %v512, %v513
  %v515 = vsel %vm123, %v496, 0.0
  %v516 = vadd.f32 %v514, %v515
  %v517 = vsel %vm123, %v497, 0.0
  %v518 = vadd.f32 %v516, %v517
  %v519 = vsel %vm123, %v498, 0.0
  %v520 = vadd.f32 %v518, %v519
  %v521 = vsel %vm123, %v499, 0.0
  %v522 = vadd.f32 %v520, %v521
  %v523 = vsel %vm123, %v500, 0.0
  %v524 = vadd.f32 %v522, %v523
  %v525 = vsel %vm123, %v501, 0.0
  %v526 = vadd.f32 %v524, %v525
  %v527 = vsel %vm123, %v502, 0.0
  %v528 = vadd.f32 %v526, %v527
  %v529 = vsel %vm123, %v503, 0.0
  %v530 = vadd.f32 %v528, %v529
  %v531 = vsel %vm123, %v504, 0.0
  %v532 = vadd.f32 %v530, %v531
  %v533 = vsel %vm123, %v505, 0.0
  %v534 = vadd.f32 %v532, %v533
  %v535 = vsel %vm123, %v506, 0.0
  %v536 = vadd.f32 %v534, %v535
  %v537 = vsel %vm123, %v507, 0.0
  %v538 = vadd.f32 %v536, %v537
  %v539 = vrot.slane %v538, 4
  %v540 = vadd.f32 %v538, %v539
  %v541 = vrot.slane %v540, 2
  %v542 = vadd.f32 %v540, %v541
  %v543 = vrot.slane %v542, 1
  %v544 = vadd.f32 %v542, %v543
  %v545 = vmul.f32 %v544, %v167
  %v546 = vadd.f32 %v545, 1e-05
  %v547 = vrsqrt.pop %v546
  %v548 = vmul.f32 %v547, %v546
  %v549 = vmul.f32 %v548, %v547
  %v550 = vmul.f32 0.5, %v549
  %v551 = vsub.f32 1.5, %v550
  %v552 = vmul.f32 %v547, %v551
  %vm553 = vweird.f32 %v546
  %vm554 = vweird.f32 %v547
  %vm555 = vmor %vm553, %vm554
  %v556 = vsel %vm555, %v547, %v552
  %v557 = vmul.f32 %v476, %v556
  %v558 = vmul.f32 %v477, %v556
  %v559 = vmul.f32 %v478, %v556
  %v560 = vmul.f32 %v479, %v556
  %v561 = vmul.f32 %v480, %v556
  %v562 = vmul.f32 %v481, %v556
  %v563 = vmul.f32 %v482, %v556
  %v564 = vmul.f32 %v483, %v556
  %v565 = vmul.f32 %v484, %v556
  %v566 = vmul.f32 %v485, %v556
  %v567 = vmul.f32 %v486, %v556
  %v568 = vmul.f32 %v487, %v556
  %v569 = vmul.f32 %v488, %v556
  %v570 = vmul.f32 %v489, %v556
  %v571 = vmul.f32 %v490, %v556
  %v572 = vmul.f32 %v491, %v556
  %573 = vrot.lane.b32.xlu0 %v267, 126
  %v574 = vpop.permute.xlu0 %573
  %v576 = vmul.f32 %v557, %v574
  %v577 = vmul.f32 %v558, %v574
  %v578 = vmul.f32 %v559, %v574
  %v579 = vmul.f32 %v560, %v574
  %v580 = vmul.f32 %v561, %v574
  %v581 = vmul.f32 %v562, %v574
  %v582 = vmul.f32 %v563, %v574
  %v583 = vmul.f32 %v564, %v574
  %v584 = vmul.f32 %v565, %v574
  %v585 = vmul.f32 %v566, %v574
  %v586 = vmul.f32 %v567, %v574
  %v587 = vmul.f32 %v568, %v574
  %v588 = vmul.f32 %v569, %v574
  %v589 = vmul.f32 %v570, %v574
  %v590 = vmul.f32 %v571, %v574
  %v591 = vmul.f32 %v572, %v574
  %592 = vrot.lane.b32.xlu0 %v286, 126
  %v593 = vpop.permute.xlu0 %592
  %v595 = vadd.f32 %v576, %v593
  %v596 = vadd.f32 %v577, %v593
  %v597 = vadd.f32 %v578, %v593
  %v598 = vadd.f32 %v579, %v593
  %v599 = vadd.f32 %v580, %v593
  %v600 = vadd.f32 %v581, %v593
  %v601 = vadd.f32 %v582, %v593
  %v602 = vadd.f32 %v583, %v593
  %v603 = vadd.f32 %v584, %v593
  %v604 = vadd.f32 %v585, %v593
  %v605 = vadd.f32 %v586, %v593
  %v606 = vadd.f32 %v587, %v593
  %v607 = vadd.f32 %v588, %v593
  %v608 = vadd.f32 %v589, %v593
  %v609 = vadd.f32 %v590, %v593
  %v610 = vadd.f32 %v591, %v593
  %v611 = vmax.f32 %v595, 0.0
  %v612 = vmax.f32 %v596, 0.0
  %v613 = vmax.f32 %v597, 0.0
  %v614 = vmax.f32 %v598, 0.0
  %v615 = vmax.f32 %v599, 0.0
  %v616 = vmax.f32 %v600, 0.0
  %v617 = vmax.f32 %v601, 0.0
  %v618 = vmax.f32 %v602, 0.0
  %v619 = vmax.f32 %v603, 0.0
  %v620 = vmax.f32 %v604, 0.0
  %v621 = vmax.f32 %v605, 0.0
  %v622 = vmax.f32 %v606, 0.0
  %v623 = vmax.f32 %v607, 0.0
  %v624 = vmax.f32 %v608, 0.0
  %v625 = vmax.f32 %v609, 0.0
  %v626 = vmax.f32 %v610, 0.0
  %643 = vrot.lane.b32.xlu0 %v611, 2
  %v644 = vpop.permute.xlu0 %643
  %645 = vrot.lane.b32.xlu0 %v612, 2
  %v646 = vpop.permute.xlu0 %645
  %647 = vrot.lane.b32.xlu0 %v613, 2
  %v648 = vpop.permute.xlu0 %647
  %649 = vrot.lane.b32.xlu0 %v614, 2
  %v650 = vpop.permute.xlu0 %649
  %651 = vrot.lane.b32.xlu0 %v615, 2
  %v652 = vpop.permute.xlu0 %651
  %653 = vrot.lane.b32.xlu0 %v616, 2
  %v654 = vpop.permute.xlu0 %653
  %655 = vrot.lane.b32.xlu0 %v617, 2
  %v656 = vpop.permute.xlu0 %655
  %657 = vrot.lane.b32.xlu0 %v618, 2
  %v658 = vpop.permute.xlu0 %657
  %659 = vrot.lane.b32.xlu0 %v619, 2
  %v660 = vpop.permute.xlu0 %659
  %661 = vrot.lane.b32.xlu0 %v620, 2
  %v662 = vpop.permute.xlu0 %661
  %663 = vrot.lane.b32.xlu0 %v621, 2
  %v664 = vpop.permute.xlu0 %663
  %665 = vrot.lane.b32.xlu0 %v622, 2
  %v666 = vpop.permute.xlu0 %665
  %667 = vrot.lane.b32.xlu0 %v623, 2
  %v668 = vpop.permute.xlu0 %667
  %669 = vrot.lane.b32.xlu0 %v624, 2
  %v670 = vpop.permute.xlu0 %669
  %671 = vrot.lane.b32.xlu0 %v625, 2
  %v672 = vpop.permute.xlu0 %671
  %673 = vrot.lane.b32.xlu0 %v626, 2
  %v674 = vpop.permute.xlu0 %673
  %vm691 = vcmask 31760
  %692 = vst.msk [vmem:[%s4] sm:$0xff] %vm691, %v644
  %693 = vst.msk [vmem:[%s4 + $0x8] sm:$0xff] %vm691, %v646
  %694 = vst.msk [vmem:[%s4 + $0x10] sm:$0xff] %vm691, %v648
  %695 = vst.msk [vmem:[%s4 + $0x18] sm:$0xff] %vm691, %v650
  %696 = vst.msk [vmem:[%s4 + $0x20] sm:$0xff] %vm691, %v652
  %697 = vst.msk [vmem:[%s4 + $0x28] sm:$0xff] %vm691, %v654
  %698 = vst.msk [vmem:[%s4 + $0x30] sm:$0xff] %vm691, %v656
  %699 = vst.msk [vmem:[%s4 + $0x38] sm:$0xff] %vm691, %v658
  %700 = vst.msk [vmem:[%s4 + $0x40] sm:$0xff] %vm691, %v660
  %701 = vst.msk [vmem:[%s4 + $0x48] sm:$0xff] %vm691, %v662
  %702 = vst.msk [vmem:[%s4 + $0x50] sm:$0xff] %vm691, %v664
  %703 = vst.msk [vmem:[%s4 + $0x58] sm:$0xff] %vm691, %v666
  %704 = vst.msk [vmem:[%s4 + $0x60] sm:$0xff] %vm691, %v668
  %705 = vst.msk [vmem:[%s4 + $0x68] sm:$0xff] %vm691, %v670
  %706 = vst.msk [vmem:[%s4 + $0x70] sm:$0xff] %vm691, %v672
  %707 = vst.msk [vmem:[%s4 + $0x78] sm:$0xff] %vm691, %v674
  // Predicated region
  $region18: #{bottleneck_forward.3} parent=0 // pred_check
    _
  $region19: #{bottleneck_forward.3} parent=0 // pred_check_branch
    %709 = sbr.rel (0) target = $region21
  $region20: #{bottleneck_forward.3} parent=0 // pred_region
    _
  $region21: #{bottleneck_forward.3} parent=0 // pred_fallthru
    _
  // Predicated region
  $region22: #{bottleneck_forward.3} parent=0 // pred_check
    _
  $region23: #{bottleneck_forward.3} parent=0 // pred_check_branch
    %711 = sbr.rel (0) target = $region25
  $region24: #{bottleneck_forward.3} parent=0 // pred_region
    _
  $region25: #{bottleneck_forward.3} parent=0 // pred_fallthru
    _

// kernel: bottleneck_forward.5
$region0: #{bottleneck_forward.5}
  #allocation0 [shape = 'u32[]', space=smem, size = 0x4, offset = 0x4, fixed_abs, tag = 'smem constant byte address 0x4 - core index']
  #allocation1 [shape = 'u32[72,128]{1,0:T(1,128)}', space=vmem, size = 0x9000, scoped, tag = 'internal scratch']
  %s0 = inlined_call_operand.vmem [shape: f32[128,4], index: 0, kind: input, shape index: {}]
  %s1 = inlined_call_operand.vmem [shape: f32[1,4], index: 1, kind: input, shape index: {}]
  %s2 = inlined_call_operand.vmem [shape: f32[1,4], index: 2, kind: input, shape index: {}]
  %s3 = inlined_call_operand.vmem [shape: bf16[4,16], index: 3, kind: input, shape index: {}]
  %s4 = inlined_call_operand.vmem [shape: f32[1,16], index: 4, kind: input, shape index: {}]
  %s5 = inlined_call_operand.vmem [shape: f32[1,16], index: 5, kind: input, shape index: {}]
  %s6 = inlined_call_operand.vmem [shape: f32[128,16], index: 6, kind: input, shape index: {}]
  %s7 = inlined_call_operand.hbm [shape: f32[128,16], index: 7, kind: output, shape index: {0}]
  %s8 = inlined_call_operand.hbm [shape: f32[128,16], index: 8, kind: output, shape index: {1}]
  %9 = xla_tuple %s7, %s8
  %s10 = sld [smem:[#allocation0]]
  $region46: #{bottleneck_forward.5} parent=0
    _
  %s12 = ssub.s32 1, %s10
  %s13 = scalar_select 0, %s12, %s10
  $region1: #{bottleneck_forward.5} parent=0
    #allocation2 [shape = 'u8[65536]{0}', space=vmem, size = 0x10000, scoped, tag = 'output window, operand 0, single buffered']
    #allocation3 [shape = 's32[1]{0}', space=sflag, size = 0x4, scoped, tag = 'scoped memory for bottleneck_forward.5']
    #allocation4 [shape = 'u8[65536]{0}', space=vmem, size = 0x10000, scoped, tag = 'output window, operand 1, single buffered']
    #allocation5 [shape = 's32[1]{0}', space=sflag, size = 0x4, scoped, tag = 'scoped memory for bottleneck_forward.5']
    %14 = vsyncpa [#allocation3], 0
    %15 = vsyncpa [#allocation5], 0
    // Predicated region
    $region2: #{bottleneck_forward.5} parent=1 // pred_check
      _
    $region3: #{bottleneck_forward.5} parent=1 // pred_check_branch
      %17 = sbr.rel (0) target = $region5
    $region4: #{bottleneck_forward.5} parent=1 // pred_region
      _
    $region5: #{bottleneck_forward.5} parent=1 // pred_fallthru
      _
    // Predicated region
    $region6: #{bottleneck_forward.5} parent=1 // pred_check
      _
    $region7: #{bottleneck_forward.5} parent=1 // pred_check_branch
      %19 = sbr.rel (0) target = $region9
    $region8: #{bottleneck_forward.5} parent=1 // pred_region
      _
    $region9: #{bottleneck_forward.5} parent=1 // pred_fallthru
      _
    // Predicated region
    $region10: #{bottleneck_forward.5} parent=1 // pred_check
      _
    $region11: #{bottleneck_forward.5} parent=1 // pred_check_branch
      %21 = sbr.rel (0) target = $region13
    $region12: #{bottleneck_forward.5} parent=1 // pred_region
      _
    $region13: #{bottleneck_forward.5} parent=1 // pred_fallthru
      _
    // Predicated region
    $region14: #{bottleneck_forward.5} parent=1 // pred_check
      _
    $region15: #{bottleneck_forward.5} parent=1 // pred_check_branch
      %23 = sbr.rel (0) target = $region17
    $region16: #{bottleneck_forward.5} parent=1 // pred_region
      _
    $region17: #{bottleneck_forward.5} parent=1 // pred_fallthru
      _
    // Predicated region
    $region18: #{bottleneck_forward.5} parent=1 // pred_check
      _
    $region19: #{bottleneck_forward.5} parent=1 // pred_check_branch
      %25 = sbr.rel (0) target = $region21
    $region20: #{bottleneck_forward.5} parent=1 // pred_region
      _
    $region21: #{bottleneck_forward.5} parent=1 // pred_fallthru
      _
    // Predicated region
    $region22: #{bottleneck_forward.5} parent=1 // pred_check
      _
    $region23: #{bottleneck_forward.5} parent=1 // pred_check_branch
      %27 = sbr.rel (0) target = $region25
    $region24: #{bottleneck_forward.5} parent=1 // pred_region
      _
    $region25: #{bottleneck_forward.5} parent=1 // pred_fallthru
      _
    // Predicated region
    $region26: #{bottleneck_forward.5} parent=1 // pred_check
      _
    $region27: #{bottleneck_forward.5} parent=1 // pred_check_branch
      %29 = sbr.rel (0) target = $region29
    $region28: #{bottleneck_forward.5} parent=1 // pred_region
      _
    $region29: #{bottleneck_forward.5} parent=1 // pred_fallthru
      _
    %v31 = vld [vmem:[%s0] sm:$0xff]
    %v32 = vld [vmem:[%s0 + $0x8] sm:$0xff]
    %v33 = vld [vmem:[%s0 + $0x10] sm:$0xff]
    %v34 = vld [vmem:[%s0 + $0x18] sm:$0xff]
    %v35 = vld [vmem:[%s0 + $0x20] sm:$0xff]
    %v36 = vld [vmem:[%s0 + $0x28] sm:$0xff]
    %v37 = vld [vmem:[%s0 + $0x30] sm:$0xff]
    %v38 = vld [vmem:[%s0 + $0x38] sm:$0xff]
    %v39 = vld [vmem:[%s0 + $0x40] sm:$0xff]
    %v40 = vld [vmem:[%s0 + $0x48] sm:$0xff]
    %v41 = vld [vmem:[%s0 + $0x50] sm:$0xff]
    %v42 = vld [vmem:[%s0 + $0x58] sm:$0xff]
    %v43 = vld [vmem:[%s0 + $0x60] sm:$0xff]
    %v44 = vld [vmem:[%s0 + $0x68] sm:$0xff]
    %v45 = vld [vmem:[%s0 + $0x70] sm:$0xff]
    %v46 = vld [vmem:[%s0 + $0x78] sm:$0xff]
    %vm47 = vcmask 31744
    %v48 = vsel %vm47, %v31, 0.0
    %v49 = vsel %vm47, %v32, 0.0
    %v50 = vadd.f32 %v48, %v49
    %v51 = vsel %vm47, %v33, 0.0
    %v52 = vadd.f32 %v50, %v51
    %v53 = vsel %vm47, %v34, 0.0
    %v54 = vadd.f32 %v52, %v53
    %v55 = vsel %vm47, %v35, 0.0
    %v56 = vadd.f32 %v54, %v55
    %v57 = vsel %vm47, %v36, 0.0
    %v58 = vadd.f32 %v56, %v57
    %v59 = vsel %vm47, %v37, 0.0
    %v60 = vadd.f32 %v58, %v59
    %v61 = vsel %vm47, %v38, 0.0
    %v62 = vadd.f32 %v60, %v61
    %v63 = vsel %vm47, %v39, 0.0
    %v64 = vadd.f32 %v62, %v63
    %v65 = vsel %vm47, %v40, 0.0
    %v66 = vadd.f32 %v64, %v65
    %v67 = vsel %vm47, %v41, 0.0
    %v68 = vadd.f32 %v66, %v67
    %v69 = vsel %vm47, %v42, 0.0
    %v70 = vadd.f32 %v68, %v69
    %v71 = vsel %vm47, %v43, 0.0
    %v72 = vadd.f32 %v70, %v71
    %v73 = vsel %vm47, %v44, 0.0
    %v74 = vadd.f32 %v72, %v73
    %v75 = vsel %vm47, %v45, 0.0
    %v76 = vadd.f32 %v74, %v75
    %v77 = vsel %vm47, %v46, 0.0
    %v78 = vadd.f32 %v76, %v77
    %v79 = vrot.slane %v78, 4
    %v80 = vadd.f32 %v78, %v79
    %v81 = vrot.slane %v80, 2
    %v82 = vadd.f32 %v80, %v81
    %v83 = vrot.slane %v82, 1
    %v84 = vadd.f32 %v82, %v83
    %v85 = vrcp.pop 128.0
    %v86 = vmul.f32 128.0, %v85
    %v87 = vsub.f32 1.0, %v86
    %v88 = vmul.f32 %v85, %v87
    %v89 = vadd.f32 %v85, %v88
    %vm90 = vweird.f32 %v85
    %v91 = vsel %vm90, %v85, %v89
    %v92 = vmul.f32 %v84, %v91
    %v93 = vsub.f32 %v31, %v92
    %v94 = vsub.f32 %v32, %v92
    %v95 = vsub.f32 %v33, %v92
    %v96 = vsub.f32 %v34, %v92
    %v97 = vsub.f32 %v35, %v92
    %v98 = vsub.f32 %v36, %v92
    %v99 = vsub.f32 %v37, %v92
    %v100 = vsub.f32 %v38, %v92
    %v101 = vsub.f32 %v39, %v92
    %v102 = vsub.f32 %v40, %v92
    %v103 = vsub.f32 %v41, %v92
    %v104 = vsub.f32 %v42, %v92
    %v105 = vsub.f32 %v43, %v92
    %v106 = vsub.f32 %v44, %v92
    %v107 = vsub.f32 %v45, %v92
    %v108 = vsub.f32 %v46, %v92
    %v109 = vmul.f32 %v93, %v93
    %v110 = vmul.f32 %v94, %v94
    %v111 = vmul.f32 %v95, %v95
    %v112 = vmul.f32 %v96, %v96
    %v113 = vmul.f32 %v97, %v97
    %v114 = vmul.f32 %v98, %v98
    %v115 = vmul.f32 %v99, %v99
    %v116 = vmul.f32 %v100, %v100
    %v117 = vmul.f32 %v101, %v101
    %v118 = vmul.f32 %v102, %v102
    %v119 = vmul.f32 %v103, %v103
    %v120 = vmul.f32 %v104, %v104
    %v121 = vmul.f32 %v105, %v105
    %v122 = vmul.f32 %v106, %v106
    %v123 = vmul.f32 %v107, %v107
    %v124 = vmul.f32 %v108, %v108
    %v125 = vsel %vm47, %v109, 0.0
    %v126 = vsel %vm47, %v110, 0.0
    %v127 = vadd.f32 %v125, %v126
    %v128 = vsel %vm47, %v111, 0.0
    %v129 = vadd.f32 %v127, %v128
    %v130 = vsel %vm47, %v112, 0.0
    %v131 = vadd.f32 %v129, %v130
    %v132 = vsel %vm47, %v113, 0.0
    %v133 = vadd.f32 %v131, %v132
    %v134 = vsel %vm47, %v114, 0.0
    %v135 = vadd.f32 %v133, %v134
    %v136 = vsel %vm47, %v115, 0.0
    %v137 = vadd.f32 %v135, %v136
    %v138 = vsel %vm47, %v116, 0.0
    %v139 = vadd.f32 %v137, %v138
    %v140 = vsel %vm47, %v117, 0.0
    %v141 = vadd.f32 %v139, %v140
    %v142 = vsel %vm47, %v118, 0.0
    %v143 = vadd.f32 %v141, %v142
    %v144 = vsel %vm47, %v119, 0.0
    %v145 = vadd.f32 %v143, %v144
    %v146 = vsel %vm47, %v120, 0.0
    %v147 = vadd.f32 %v145, %v146
    %v148 = vsel %vm47, %v121, 0.0
    %v149 = vadd.f32 %v147, %v148
    %v150 = vsel %vm47, %v122, 0.0
    %v151 = vadd.f32 %v149, %v150
    %v152 = vsel %vm47, %v123, 0.0
    %v153 = vadd.f32 %v151, %v152
    %v154 = vsel %vm47, %v124, 0.0
    %v155 = vadd.f32 %v153, %v154
    %v156 = vrot.slane %v155, 4
    %v157 = vadd.f32 %v155, %v156
    %v158 = vrot.slane %v157, 2
    %v159 = vadd.f32 %v157, %v158
    %v160 = vrot.slane %v159, 1
    %v161 = vadd.f32 %v159, %v160
    %v162 = vmul.f32 %v161, %v91
    %v163 = vadd.f32 %v162, 1e-05
    %v164 = vrsqrt.pop %v163
    %v165 = vmul.f32 %v164, %v163
    %v166 = vmul.f32 %v165, %v164
    %v167 = vmul.f32 0.5, %v166
    %v168 = vsub.f32 1.5, %v167
    %v169 = vmul.f32 %v164, %v168
    %vm170 = vweird.f32 %v163
    %vm171 = vweird.f32 %v164
    %vm172 = vmor %vm170, %vm171
    %v173 = vsel %vm172, %v164, %v169
    %v174 = vmul.f32 %v93, %v173
    %v175 = vmul.f32 %v94, %v173
    %v176 = vmul.f32 %v95, %v173
    %v177 = vmul.f32 %v96, %v173
    %v178 = vmul.f32 %v97, %v173
    %v179 = vmul.f32 %v98, %v173
    %v180 = vmul.f32 %v99, %v173
    %v181 = vmul.f32 %v100, %v173
    %v182 = vmul.f32 %v101, %v173
    %v183 = vmul.f32 %v102, %v173
    %v184 = vmul.f32 %v103, %v173
    %v185 = vmul.f32 %v104, %v173
    %v186 = vmul.f32 %v105, %v173
    %v187 = vmul.f32 %v106, %v173
    %v188 = vmul.f32 %v107, %v173
    %v189 = vmul.f32 %v108, %v173
    %v190 = vld [vmem:[%s1] sm:$0x1]
    %v192 = vperm.slane %v190, 0
    %v194 = vmul.f32 %v174, %v192
    %v195 = vmul.f32 %v175, %v192
    %v196 = vmul.f32 %v176, %v192
    %v197 = vmul.f32 %v177, %v192
    %v198 = vmul.f32 %v178, %v192
    %v199 = vmul.f32 %v179, %v192
    %v200 = vmul.f32 %v180, %v192
    %v201 = vmul.f32 %v181, %v192
    %v202 = vmul.f32 %v182, %v192
    %v203 = vmul.f32 %v183, %v192
    %v204 = vmul.f32 %v184, %v192
    %v205 = vmul.f32 %v185, %v192
    %v206 = vmul.f32 %v186, %v192
    %v207 = vmul.f32 %v187, %v192
    %v208 = vmul.f32 %v188, %v192
    %v209 = vmul.f32 %v189, %v192
    %v210 = vld [vmem:[%s2] sm:$0x1]
    %v212 = vperm.slane %v210, 0
    %v214 = vadd.f32 %v194, %v212
    %v215 = vadd.f32 %v195, %v212
    %v216 = vadd.f32 %v196, %v212
    %v217 = vadd.f32 %v197, %v212
    %v218 = vadd.f32 %v198, %v212
    %v219 = vadd.f32 %v199, %v212
    %v220 = vadd.f32 %v200, %v212
    %v221 = vadd.f32 %v201, %v212
    %v222 = vadd.f32 %v202, %v212
    %v223 = vadd.f32 %v203, %v212
    %v224 = vadd.f32 %v204, %v212
    %v225 = vadd.f32 %v205, %v212
    %v226 = vadd.f32 %v206, %v212
    %v227 = vadd.f32 %v207, %v212
    %v228 = vadd.f32 %v208, %v212
    %v229 = vadd.f32 %v209, %v212
    %v230 = vmax.f32 %v214, 0.0
    %v231 = vmax.f32 %v215, 0.0
    %v232 = vmax.f32 %v216, 0.0
    %v233 = vmax.f32 %v217, 0.0
    %v234 = vmax.f32 %v218, 0.0
    %v235 = vmax.f32 %v219, 0.0
    %v236 = vmax.f32 %v220, 0.0
    %v237 = vmax.f32 %v221, 0.0
    %v238 = vmax.f32 %v222, 0.0
    %v239 = vmax.f32 %v223, 0.0
    %v240 = vmax.f32 %v224, 0.0
    %v241 = vmax.f32 %v225, 0.0
    %v242 = vmax.f32 %v226, 0.0
    %v243 = vmax.f32 %v227, 0.0
    %v244 = vmax.f32 %v228, 0.0
    %v245 = vmax.f32 %v229, 0.0
    %v246 = vpack.c.bf16 %v231, %v230
    %v247 = vpack.c.bf16 %v233, %v232
    %v248 = vpack.c.bf16 %v235, %v234
    %v249 = vpack.c.bf16 %v237, %v236
    %v250 = vpack.c.bf16 %v239, %v238
    %v251 = vpack.c.bf16 %v241, %v240
    %v252 = vpack.c.bf16 %v243, %v242
    %v253 = vpack.c.bf16 %v245, %v244
    %v254 = vld [vmem:[%s3] sm:$0x3]
    %v256 = vsel %vm47, %v246, 0
    %v259 = vsel %vm47, %v247, 0
    %v262 = vsel %vm47, %v248, 0
    %v265 = vsel %vm47, %v249, 0
    %v268 = vsel %vm47, %v250, 0
    %v271 = vsel %vm47, %v251, 0
    %v274 = vsel %vm47, %v252, 0
    %v277 = vsel %vm47, %v253, 0
    %vm279 = vcmask 1041408
    %v281 = vsel %vm279, %v254, 0
    %283 = vmatpush.bf16.msra.mxu0 0
    %284 = vmatpush.bf16.msra.mxu0 0
    %285 = vmatpush.bf16.msra.mxu0 0
    %286 = vmatpush.bf16.msra.mxu0 0
    %287 = vmatpush.bf16.msra.mxu0 0
    %288 = vmatpush.bf16.msra.mxu0 0
    %289 = vmatpush.bf16.msra.mxu0 0
    %290 = vmatpush.bf16.msra.mxu0 %v281
    %291 = vmatmul.bf16.gmra.mxu0 %v256
    %v292 = vpop.f32.mrf.mxu0
    %v293 = vadd.f32 0.0, %v292
    %v294 = vpop.f32.mrf.mxu0
    %v295 = vadd.f32 0.0, %v294
    %296 = vmatmul.bf16.gmra.mxu0 %v259
    %v297 = vpop.f32.mrf.mxu0
    %v298 = vadd.f32 0.0, %v297
    %v299 = vpop.f32.mrf.mxu0
    %v300 = vadd.f32 0.0, %v299
    %301 = vmatmul.bf16.gmra.mxu0 %v262
    %v302 = vpop.f32.mrf.mxu0
    %v303 = vadd.f32 0.0, %v302
    %v304 = vpop.f32.mrf.mxu0
    %v305 = vadd.f32 0.0, %v304
    %306 = vmatmul.bf16.gmra.mxu0 %v265
    %v307 = vpop.f32.mrf.mxu0
    %v308 = vadd.f32 0.0, %v307
    %v309 = vpop.f32.mrf.mxu0
    %v310 = vadd.f32 0.0, %v309
    %311 = vmatmul.bf16.gmra.mxu0 %v268
    %v312 = vpop.f32.mrf.mxu0
    %v313 = vadd.f32 0.0, %v312
    %v314 = vpop.f32.mrf.mxu0
    %v315 = vadd.f32 0.0, %v314
    %316 = vmatmul.bf16.gmra.mxu0 %v271
    %v317 = vpop.f32.mrf.mxu0
    %v318 = vadd.f32 0.0, %v317
    %v319 = vpop.f32.mrf.mxu0
    %v320 = vadd.f32 0.0, %v319
    %321 = vmatmul.bf16.gmra.mxu0 %v274
    %v322 = vpop.f32.mrf.mxu0
    %v323 = vadd.f32 0.0, %v322
    %v324 = vpop.f32.mrf.mxu0
    %v325 = vadd.f32 0.0, %v324
    %326 = vmatmul.bf16.gmra.mxu0 %v277
    %v327 = vpop.f32.mrf.mxu0
    %v328 = vadd.f32 0.0, %v327
    %v329 = vpop.f32.mrf.mxu0
    %v330 = vadd.f32 0.0, %v329
    %331 = vdwg.mxu0
    %vm332 = vcmask 130048
    %v333 = vsel %vm332, %v293, 0.0
    %v334 = vsel %vm332, %v295, 0.0
    %v335 = vadd.f32 %v333, %v334
    %v336 = vsel %vm332, %v298, 0.0
    %v337 = vadd.f32 %v335, %v336
    %v338 = vsel %vm332, %v300, 0.0
    %v339 = vadd.f32 %v337, %v338
    %v340 = vsel %vm332, %v303, 0.0
    %v341 = vadd.f32 %v339, %v340
    %v342 = vsel %vm332, %v305, 0.0
    %v343 = vadd.f32 %v341, %v342
    %v344 = vsel %vm332, %v308, 0.0
    %v345 = vadd.f32 %v343, %v344
    %v346 = vsel %vm332, %v310, 0.0
    %v347 = vadd.f32 %v345, %v346
    %v348 = vsel %vm332, %v313, 0.0
    %v349 = vadd.f32 %v347, %v348
    %v350 = vsel %vm332, %v315, 0.0
    %v351 = vadd.f32 %v349, %v350
    %v352 = vsel %vm332, %v318, 0.0
    %v353 = vadd.f32 %v351, %v352
    %v354 = vsel %vm332, %v320, 0.0
    %v355 = vadd.f32 %v353, %v354
    %v356 = vsel %vm332, %v323, 0.0
    %v357 = vadd.f32 %v355, %v356
    %v358 = vsel %vm332, %v325, 0.0
    %v359 = vadd.f32 %v357, %v358
    %v360 = vsel %vm332, %v328, 0.0
    %v361 = vadd.f32 %v359, %v360
    %v362 = vsel %vm332, %v330, 0.0
    %v363 = vadd.f32 %v361, %v362
    %v364 = vrot.slane %v363, 4
    %v365 = vadd.f32 %v363, %v364
    %v366 = vrot.slane %v365, 2
    %v367 = vadd.f32 %v365, %v366
    %v368 = vrot.slane %v367, 1
    %v369 = vadd.f32 %v367, %v368
    %v370 = vmul.f32 %v369, %v91
    %v371 = vsub.f32 %v293, %v370
    %v372 = vsub.f32 %v295, %v370
    %v373 = vsub.f32 %v298, %v370
    %v374 = vsub.f32 %v300, %v370
    %v375 = vsub.f32 %v303, %v370
    %v376 = vsub.f32 %v305, %v370
    %v377 = vsub.f32 %v308, %v370
    %v378 = vsub.f32 %v310, %v370
    %v379 = vsub.f32 %v313, %v370
    %v380 = vsub.f32 %v315, %v370
    %v381 = vsub.f32 %v318, %v370
    %v382 = vsub.f32 %v320, %v370
    %v383 = vsub.f32 %v323, %v370
    %v384 = vsub.f32 %v325, %v370
    %v385 = vsub.f32 %v328, %v370
    %v386 = vsub.f32 %v330, %v370
    %v387 = vmul.f32 %v371, %v371
    %v388 = vmul.f32 %v372, %v372
    %v389 = vmul.f32 %v373, %v373
    %v390 = vmul.f32 %v374, %v374
    %v391 = vmul.f32 %v375, %v375
    %v392 = vmul.f32 %v376, %v376
    %v393 = vmul.f32 %v377, %v377
    %v394 = vmul.f32 %v378, %v378
    %v395 = vmul.f32 %v379, %v379
    %v396 = vmul.f32 %v380, %v380
    %v397 = vmul.f32 %v381, %v381
    %v398 = vmul.f32 %v382, %v382
    %v399 = vmul.f32 %v383, %v383
    %v400 = vmul.f32 %v384, %v384
    %v401 = vmul.f32 %v385, %v385
    %v402 = vmul.f32 %v386, %v386
    %v403 = vsel %vm332, %v387, 0.0
    %v404 = vsel %vm332, %v388, 0.0
    %v405 = vadd.f32 %v403, %v404
    %v406 = vsel %vm332, %v389, 0.0
    %v407 = vadd.f32 %v405, %v406
    %v408 = vsel %vm332, %v390, 0.0
    %v409 = vadd.f32 %v407, %v408
    %v410 = vsel %vm332, %v391, 0.0
    %v411 = vadd.f32 %v409, %v410
    %v412 = vsel %vm332, %v392, 0.0
    %v413 = vadd.f32 %v411, %v412
    %v414 = vsel %vm332, %v393, 0.0
    %v415 = vadd.f32 %v413, %v414
    %v416 = vsel %vm332, %v394, 0.0
    %v417 = vadd.f32 %v415, %v416
    %v418 = vsel %vm332, %v395, 0.0
    %v419 = vadd.f32 %v417, %v418
    %v420 = vsel %vm332, %v396, 0.0
    %v421 = vadd.f32 %v419, %v420
    %v422 = vsel %vm332, %v397, 0.0
    %v423 = vadd.f32 %v421, %v422
    %v424 = vsel %vm332, %v398, 0.0
    %v425 = vadd.f32 %v423, %v424
    %v426 = vsel %vm332, %v399, 0.0
    %v427 = vadd.f32 %v425, %v426
    %v428 = vsel %vm332, %v400, 0.0
    %v429 = vadd.f32 %v427, %v428
    %v430 = vsel %vm332, %v401, 0.0
    %v431 = vadd.f32 %v429, %v430
    %v432 = vsel %vm332, %v402, 0.0
    %v433 = vadd.f32 %v431, %v432
    %v434 = vrot.slane %v433, 4
    %v435 = vadd.f32 %v433, %v434
    %v436 = vrot.slane %v435, 2
    %v437 = vadd.f32 %v435, %v436
    %v438 = vrot.slane %v437, 1
    %v439 = vadd.f32 %v437, %v438
    %v440 = vmul.f32 %v439, %v91
    %v441 = vadd.f32 %v440, 1e-05
    %v442 = vrsqrt.pop %v441
    %v443 = vmul.f32 %v442, %v441
    %v444 = vmul.f32 %v443, %v442
    %v445 = vmul.f32 0.5, %v444
    %v446 = vsub.f32 1.5, %v445
    %v447 = vmul.f32 %v442, %v446
    %vm448 = vweird.f32 %v441
    %vm449 = vweird.f32 %v442
    %vm450 = vmor %vm448, %vm449
    %v451 = vsel %vm450, %v442, %v447
    %v452 = vmul.f32 %v371, %v451
    %v453 = vmul.f32 %v372, %v451
    %v454 = vmul.f32 %v373, %v451
    %v455 = vmul.f32 %v374, %v451
    %v456 = vmul.f32 %v375, %v451
    %v457 = vmul.f32 %v376, %v451
    %v458 = vmul.f32 %v377, %v451
    %v459 = vmul.f32 %v378, %v451
    %v460 = vmul.f32 %v379, %v451
    %v461 = vmul.f32 %v380, %v451
    %v462 = vmul.f32 %v381, %v451
    %v463 = vmul.f32 %v382, %v451
    %v464 = vmul.f32 %v383, %v451
    %v465 = vmul.f32 %v384, %v451
    %v466 = vmul.f32 %v385, %v451
    %v467 = vmul.f32 %v386, %v451
    %v468 = vld [vmem:[%s4] sm:$0x1]
    %v470 = vperm.slane %v468, 0
    %v472 = vmul.f32 %v452, %v470
    %v473 = vmul.f32 %v453, %v470
    %v474 = vmul.f32 %v454, %v470
    %v475 = vmul.f32 %v455, %v470
    %v476 = vmul.f32 %v456, %v470
    %v477 = vmul.f32 %v457, %v470
    %v478 = vmul.f32 %v458, %v470
    %v479 = vmul.f32 %v459, %v470
    %v480 = vmul.f32 %v460, %v470
    %v481 = vmul.f32 %v461, %v470
    %v482 = vmul.f32 %v462, %v470
    %v483 = vmul.f32 %v463, %v470
    %v484 = vmul.f32 %v464, %v470
    %v485 = vmul.f32 %v465, %v470
    %v486 = vmul.f32 %v466, %v470
    %v487 = vmul.f32 %v467, %v470
    %v488 = vld [vmem:[%s5] sm:$0x1]
    %v490 = vperm.slane %v488, 0
    %v492 = vadd.f32 %v472, %v490
    %v493 = vadd.f32 %v473, %v490
    %v494 = vadd.f32 %v474, %v490
    %v495 = vadd.f32 %v475, %v490
    %v496 = vadd.f32 %v476, %v490
    %v497 = vadd.f32 %v477, %v490
    %v498 = vadd.f32 %v478, %v490
    %v499 = vadd.f32 %v479, %v490
    %v500 = vadd.f32 %v480, %v490
    %v501 = vadd.f32 %v481, %v490
    %v502 = vadd.f32 %v482, %v490
    %v503 = vadd.f32 %v483, %v490
    %v504 = vadd.f32 %v484, %v490
    %v505 = vadd.f32 %v485, %v490
    %v506 = vadd.f32 %v486, %v490
    %v507 = vadd.f32 %v487, %v490
    %v508 = vld [vmem:[%s6] sm:$0xff]
    %v509 = vld [vmem:[%s6 + $0x8] sm:$0xff]
    %v510 = vld [vmem:[%s6 + $0x10] sm:$0xff]
    %v511 = vld [vmem:[%s6 + $0x18] sm:$0xff]
    %v512 = vld [vmem:[%s6 + $0x20] sm:$0xff]
    %v513 = vld [vmem:[%s6 + $0x28] sm:$0xff]
    %v514 = vld [vmem:[%s6 + $0x30] sm:$0xff]
    %v515 = vld [vmem:[%s6 + $0x38] sm:$0xff]
    %v516 = vld [vmem:[%s6 + $0x40] sm:$0xff]
    %v517 = vld [vmem:[%s6 + $0x48] sm:$0xff]
    %v518 = vld [vmem:[%s6 + $0x50] sm:$0xff]
    %v519 = vld [vmem:[%s6 + $0x58] sm:$0xff]
    %v520 = vld [vmem:[%s6 + $0x60] sm:$0xff]
    %v521 = vld [vmem:[%s6 + $0x68] sm:$0xff]
    %v522 = vld [vmem:[%s6 + $0x70] sm:$0xff]
    %v523 = vld [vmem:[%s6 + $0x78] sm:$0xff]
    %v524 = vadd.f32 %v492, %v508
    %v525 = vadd.f32 %v493, %v509
    %v526 = vadd.f32 %v494, %v510
    %v527 = vadd.f32 %v495, %v511
    %v528 = vadd.f32 %v496, %v512
    %v529 = vadd.f32 %v497, %v513
    %v530 = vadd.f32 %v498, %v514
    %v531 = vadd.f32 %v499, %v515
    %v532 = vadd.f32 %v500, %v516
    %v533 = vadd.f32 %v501, %v517
    %v534 = vadd.f32 %v502, %v518
    %v535 = vadd.f32 %v503, %v519
    %v536 = vadd.f32 %v504, %v520
    %v537 = vadd.f32 %v505, %v521
    %v538 = vadd.f32 %v506, %v522
    %v539 = vadd.f32 %v507, %v523
    %v540 = vmax.f32 %v524, 0.0
    %v541 = vmax.f32 %v525, 0.0
    %v542 = vmax.f32 %v526, 0.0
    %v543 = vmax.f32 %v527, 0.0
    %v544 = vmax.f32 %v528, 0.0
    %v545 = vmax.f32 %v529, 0.0
    %v546 = vmax.f32 %v530, 0.0
    %v547 = vmax.f32 %v531, 0.0
    %v548 = vmax.f32 %v532, 0.0
    %v549 = vmax.f32 %v533, 0.0
    %v550 = vmax.f32 %v534, 0.0
    %v551 = vmax.f32 %v535, 0.0
    %v552 = vmax.f32 %v536, 0.0
    %v553 = vmax.f32 %v537, 0.0
    %v554 = vmax.f32 %v538, 0.0
    %v555 = vmax.f32 %v539, 0.0
    %556 = vst.msk [vmem:[#allocation2] sm:$0xff] %vm332, %v540
    %557 = vst.msk [vmem:[#allocation2 + $0x8] sm:$0xff] %vm332, %v541
    %558 = vst.msk [vmem:[#allocation2 + $0x10] sm:$0xff] %vm332, %v542
    %559 = vst.msk [vmem:[#allocation2 + $0x18] sm:$0xff] %vm332, %v543
    %560 = vst.msk [vmem:[#allocation2 + $0x20] sm:$0xff] %vm332, %v544
    %561 = vst.msk [vmem:[#allocation2 + $0x28] sm:$0xff] %vm332, %v545
    %562 = vst.msk [vmem:[#allocation2 + $0x30] sm:$0xff] %vm332, %v546
    %563 = vst.msk [vmem:[#allocation2 + $0x38] sm:$0xff] %vm332, %v547
    %564 = vst.msk [vmem:[#allocation2 + $0x40] sm:$0xff] %vm332, %v548
    %565 = vst.msk [vmem:[#allocation2 + $0x48] sm:$0xff] %vm332, %v549
    %566 = vst.msk [vmem:[#allocation2 + $0x50] sm:$0xff] %vm332, %v550
    %567 = vst.msk [vmem:[#allocation2 + $0x58] sm:$0xff] %vm332, %v551
    %568 = vst.msk [vmem:[#allocation2 + $0x60] sm:$0xff] %vm332, %v552
    %569 = vst.msk [vmem:[#allocation2 + $0x68] sm:$0xff] %vm332, %v553
    %570 = vst.msk [vmem:[#allocation2 + $0x70] sm:$0xff] %vm332, %v554
    %571 = vst.msk [vmem:[#allocation2 + $0x78] sm:$0xff] %vm332, %v555
    %572 = vst.msk [vmem:[#allocation4] sm:$0xff] %vm332, %v524
    %573 = vst.msk [vmem:[#allocation4 + $0x8] sm:$0xff] %vm332, %v525
    %574 = vst.msk [vmem:[#allocation4 + $0x10] sm:$0xff] %vm332, %v526
    %575 = vst.msk [vmem:[#allocation4 + $0x18] sm:$0xff] %vm332, %v527
    %576 = vst.msk [vmem:[#allocation4 + $0x20] sm:$0xff] %vm332, %v528
    %577 = vst.msk [vmem:[#allocation4 + $0x28] sm:$0xff] %vm332, %v529
    %578 = vst.msk [vmem:[#allocation4 + $0x30] sm:$0xff] %vm332, %v530
    %579 = vst.msk [vmem:[#allocation4 + $0x38] sm:$0xff] %vm332, %v531
    %580 = vst.msk [vmem:[#allocation4 + $0x40] sm:$0xff] %vm332, %v532
    %581 = vst.msk [vmem:[#allocation4 + $0x48] sm:$0xff] %vm332, %v533
    %582 = vst.msk [vmem:[#allocation4 + $0x50] sm:$0xff] %vm332, %v534
    %583 = vst.msk [vmem:[#allocation4 + $0x58] sm:$0xff] %vm332, %v535
    %584 = vst.msk [vmem:[#allocation4 + $0x60] sm:$0xff] %vm332, %v536
    %585 = vst.msk [vmem:[#allocation4 + $0x68] sm:$0xff] %vm332, %v537
    %586 = vst.msk [vmem:[#allocation4 + $0x70] sm:$0xff] %vm332, %v538
    %587 = vst.msk [vmem:[#allocation4 + $0x78] sm:$0xff] %vm332, %v539
    // Predicated region
    $region30: #{bottleneck_forward.5} parent=1 // pred_check
      _
    $region31: #{bottleneck_forward.5} parent=1 // pred_check_branch
      %589 = sbr.rel (0) target = $region33
    $region32: #{bottleneck_forward.5} parent=1 // pred_region
      %591 = vsyncadd [#allocation3], 0
      %s592 = sshll.u32 [#allocation2], 4
      %s593 = int_to_ptr.vmem [resolvable:$true] %s592
      %s594 = sshll.u32 %s7, 4
      %s595 = int_to_ptr.hbm [resolvable:$true] %s594
      %600 = dma.vmem_to_hbm [thread:$0]  %s593, 2048, %s595, [#allocation3], 128, 128, 8
    $region33: #{bottleneck_forward.5} parent=1 // pred_fallthru
      _
    // Predicated region
    $region34: #{bottleneck_forward.5} parent=1 // pred_check
      _
    $region35: #{bottleneck_forward.5} parent=1 // pred_check_branch
      %602 = sbr.rel (0) target = $region37
    $region36: #{bottleneck_forward.5} parent=1 // pred_region
      %604 = vsyncadd [#allocation5], 0
      %s605 = sshll.u32 [#allocation4], 4
      %s606 = int_to_ptr.vmem [resolvable:$true] %s605
      %s607 = sshll.u32 %s8, 4
      %s608 = int_to_ptr.hbm [resolvable:$true] %s607
      %613 = dma.vmem_to_hbm [thread:$0]  %s606, 2048, %s608, [#allocation5], 128, 128, 8
    $region37: #{bottleneck_forward.5} parent=1 // pred_fallthru
      _
    // Predicated region
    $region38: #{bottleneck_forward.5} parent=1 // pred_check
      _
    $region39: #{bottleneck_forward.5} parent=1 // pred_check_branch
      %615 = sbr.rel (0) target = $region41
    $region40: #{bottleneck_forward.5} parent=1 // pred_region
      %617 = dma.done [#allocation3], 2048
    $region41: #{bottleneck_forward.5} parent=1 // pred_fallthru
      _
    // Predicated region
    $region42: #{bottleneck_forward.5} parent=1 // pred_check
      _
    $region43: #{bottleneck_forward.5} parent=1 // pred_check_branch
      %619 = sbr.rel (0) target = $region45
    $region44: #{bottleneck_forward.5} parent=1 // pred_region
      %621 = dma.done [#allocation5], 2048
    $region45: #{bottleneck_forward.5} parent=1 // pred_fallthru
      _
    %622 = vsyncpa [#allocation3], 1
    %623 = vsyncpa [#allocation5], 1

</llo_original>
